<compile_context>
chip_gen: v7x
topology: tpu7x:2x2x1
jax: 0.10.0
libtpu: 0.0.40
codegen_flags: <defaults>
</compile_context>

<pallas_src>
import jax
import jax.numpy as jnp
from jax.experimental import pallas as pl
from jax.experimental.pallas import tpu as pltpu

_BN_EPS = 1e-5
_LANE = 128
_TILE_M_MAX = 2048


def _round_up(x, m):
    return (x + m - 1) // m * m


def _cdiv(a, b):
    return (a + b - 1) // b


def _vmem_limit_bytes():
    # Scoped VMEM limit derived from physical capacity (128 MiB v5e/v6e, 64 MiB v7x),
    # with headroom left for compiler scratch.
    cap = 64 << 20
    try:
        info = pltpu.get_tpu_info()
        c = getattr(info, "vmem_capacity_bytes", None)
        if c:
            cap = int(c)
    except Exception:
        pass
    return min((cap * 3) // 4, 100 << 20)


_VMEM_LIMIT = _vmem_limit_bytes()


def _choose_tile_m(m, k_max, cout_p):
    """Largest M-tile that keeps the double-buffered working set under ~60% of the
    scoped VMEM limit while leaving >= 2 grid tiles (v7x has 2 TensorCores)."""
    budget = int(_VMEM_LIMIT * 0.6) - 2 * (k_max * cout_p * 2)            # weights (x2 bufs)
    per_row = 2 * (k_max * 2) + 2 * (cout_p * 2) + 2 * (cout_p * 4)       # patches + bf16 y + f32 out
    tm = max(budget // max(per_row, 1), 8)
    tm = min(tm, _TILE_M_MAX)
    tm = min(tm, _round_up(_cdiv(m, 2), 8))      # >= 2 tiles whenever m > 8
    tm = max((tm // 8) * 8, 8)
    return tm


# ----------------------------- Pallas kernels ------------------------------ #

def _make_conv_stats_kernel(m_real, tile_m):
    """Pass A: one merged-tap MXU matmul per M-tile + per-tile (sum, centered-SS) stats."""
    def kernel(p_ref, w_ref, y_ref, stats_ref):
        acc = jnp.dot(p_ref[...], w_ref[...], preferred_element_type=jnp.float32)
        y_ref[...] = acc.astype(y_ref.dtype)
        # Rows past m_real are zero-padded -> matmul output there is exactly 0, so the
        # raw sum needs no mask; the centered sum-of-squares gets a closed-form
        # n_pad * mean^2 correction instead of a per-row select.
        n_valid = jnp.minimum(m_real - pl.program_id(0) * tile_m, tile_m)
        n_valid_f = n_valid.astype(jnp.float32)
        n_pad_f = jnp.float32(tile_m) - n_valid_f
        s = jnp.sum(acc, axis=0, keepdims=True)                          # (1, C)
        mean = s / n_valid_f
        centered = acc - mean
        m2 = jnp.sum(centered * centered, axis=0, keepdims=True) - n_pad_f * mean * mean
        stats_ref[...] = jnp.concatenate([s, m2], axis=0)[None]          # (1, 2, C)
    return kernel


def _conv_stats(patches, w, tile_m, m_real):
    """patches: (M_pad, K) bf16, w: (K, C_pad) bf16 -> (pre-BN bf16, per-tile stats f32)."""
    m_pad, k = patches.shape
    cout_p = w.shape[-1]
    n_tiles = m_pad // tile_m
    return pl.pallas_call(
        _make_conv_stats_kernel(m_real, tile_m),
        out_shape=(jax.ShapeDtypeStruct((m_pad, cout_p), jnp.bfloat16),
                   jax.ShapeDtypeStruct((n_tiles, 2, cout_p), jnp.float32)),
        grid=(n_tiles,),
        in_specs=[pl.BlockSpec((tile_m, k), lambda i: (i, 0)),
                  pl.BlockSpec((k, cout_p), lambda i: (0, 0))],
        out_specs=(pl.BlockSpec((tile_m, cout_p), lambda i: (i, 0)),
                   pl.BlockSpec((1, 2, cout_p), lambda i: (i, 0, 0))),
        compiler_params=pltpu.CompilerParams(
            dimension_semantics=("parallel",),
            vmem_limit_bytes=_VMEM_LIMIT),
    )(patches, w)


def _make_apply_kernel(skip_mode, fuse_relu):
    """Pass B: folded BN scale/shift (+ skip add) (+ ReLU), tiled over M."""
    def kernel(*refs):
        if skip_mode == "none":
            y_ref, scale_ref, shift_ref, out_ref = refs
            skip_ref = sk_scale_ref = sk_shift_ref = None
        elif skip_mode == "identity":
            y_ref, scale_ref, shift_ref, skip_ref, out_ref = refs
            sk_scale_ref = sk_shift_ref = None
        else:  # "proj": skip_ref is the pre-BN 1x1-conv output with its own scale/shift
            (y_ref, scale_ref, shift_ref, skip_ref,
             sk_scale_ref, sk_shift_ref, out_ref) = refs

        y = y_ref[...].astype(jnp.float32) * scale_ref[...] + shift_ref[...]
        if skip_mode == "identity":
            y = y + skip_ref[...].astype(jnp.float32)
        elif skip_mode == "proj":
            y = y + (skip_ref[...].astype(jnp.float32) * sk_scale_ref[...]
                     + sk_shift_ref[...])
        if fuse_relu:
            y = jnp.maximum(y, 0.0)
        out_ref[...] = y.astype(out_ref.dtype)
    return kernel


def _apply_bn(y, scale, shift, *, tile_m, skip=None, sk_scale=None, sk_shift=None,
              fuse_relu=True, out_dtype=jnp.float32):
    m_pad, cout_p = y.shape
    n_tiles = m_pad // tile_m
    row_spec = pl.BlockSpec((tile_m, cout_p), lambda i: (i, 0))
    vec_spec = pl.BlockSpec((1, cout_p), lambda i: (0, 0))

    if skip is None:
        skip_mode = "none"
        args, specs = [y, scale, shift], [row_spec, vec_spec, vec_spec]
    elif sk_scale is None:
        skip_mode = "identity"
        args = [y, scale, shift, skip]
        specs = [row_spec, vec_spec, vec_spec, row_spec]
    else:
        skip_mode = "proj"
        args = [y, scale, shift, skip, sk_scale, sk_shift]
        specs = [row_spec, vec_spec, vec_spec, row_spec, vec_spec, vec_spec]

    return pl.pallas_call(
        _make_apply_kernel(skip_mode, fuse_relu),
        out_shape=jax.ShapeDtypeStruct((m_pad, cout_p), out_dtype),
        grid=(n_tiles,),
        in_specs=specs,
        out_specs=row_spec,
        compiler_params=pltpu.CompilerParams(
            dimension_semantics=("parallel",),
            vmem_limit_bytes=_VMEM_LIMIT),
    )(*args)


# ------------------------------- JAX glue ---------------------------------- #

def _finalize_bn(stats, gamma, beta, m_real, tile_m):
    """Chan/Welford merge of per-tile (sum, centered-SS) partials -> folded scale/shift."""
    n_tiles = stats.shape[0]
    counts = jnp.minimum(tile_m, m_real - jnp.arange(n_tiles) * tile_m).astype(jnp.float32)
    s = stats[:, 0, :]                                   # (n_tiles, C)
    m2 = stats[:, 1, :]
    mean_i = s / counts[:, None]
    mean = jnp.sum(s, axis=0) / m_real
    d = mean_i - mean[None, :]
    M2 = jnp.sum(m2, axis=0) + jnp.sum(counts[:, None] * d * d, axis=0)
    var = jnp.maximum(M2 / m_real, 0.0)                  # biased variance (PyTorch BN train)
    scale = gamma * jax.lax.rsqrt(var + _BN_EPS)
    shift = beta - mean * scale
    return scale.reshape(1, -1), shift.reshape(1, -1)


def _pad_rows(a, m_pad):
    m = a.shape[0]
    return a if m_pad == m else jnp.pad(a, ((0, m_pad - m), (0, 0)))


def _im2col_3x3(x_nhwc, m_pad, k_pad):
    """(N,H,W,C) -> (M_pad, K_pad) patch slab; taps merged BEFORE lane padding so
    K_pad = round_up(9*C, 128).  padding=1, stride=1."""
    # TODO(synk): replace the materialized im2col with in-kernel halo-row DMA + shifted
    #             sub-views (3 accumulated matmuls) to remove the remaining ~9x
    #             activation read amplification at large C (biggest win on v5e).
    n, h, w, c = x_nhwc.shape
    xp = jnp.pad(x_nhwc, ((0, 0), (1, 1), (1, 1), (0, 0)))
    cols = [xp[:, ky:ky + h, kx:kx + w, :] for ky in range(3) for kx in range(3)]
    p = jnp.concatenate(cols, axis=-1).reshape(n * h * w, 9 * c)
    p = jnp.pad(p, ((0, 0), (0, k_pad - 9 * c)))
    return _pad_rows(p, m_pad).astype(jnp.bfloat16)


def _pack_w3x3(w, k_pad, cout_p):
    kh, kw, cin, cout = w.shape
    wf = w.reshape(kh * kw * cin, cout)      # row order (ky, kx, ci) matches im2col concat
    wf = jnp.pad(wf, ((0, k_pad - kh * kw * cin), (0, cout_p - cout)))
    return wf.astype(jnp.bfloat16)


def _pack_w1x1(w, cin_p, cout_p):
    cin, cout = w.shape
    return jnp.pad(w, ((0, cin_p - cin), (0, cout_p - cout))).astype(jnp.bfloat16)


def _pad_gb(g, b, cout_p):
    g = g.reshape(-1).astype(jnp.float32)
    b = b.reshape(-1).astype(jnp.float32)
    cout = g.shape[0]
    return jnp.pad(g, (0, cout_p - cout)), jnp.pad(b, (0, cout_p - cout))


@jax.jit
def resblock_forward(x_nchw, params):
    """Pallas ResBlock.forward (stride=1; identity or 1x1-projection skip).
    x_nchw: (N, Cin, H, W) float32 (PyTorch layout) -> (N, Cout, H, W) float32."""
    # TODO(synk): stride=2 downsampling variant of the PyTorch module is not implemented.
    x = jnp.transpose(x_nchw.astype(jnp.float32), (0, 2, 3, 1))     # NCHW -> NHWC
    n, h, w, cin = x.shape
    cout = params["w1"].shape[-1]
    m = n * h * w
    identity_skip = (cin == cout) and ("wsk" not in params)

    cin_p = _round_up(cin, _LANE)
    cout_p = _round_up(cout, _LANE)
    k1 = _round_up(9 * cin, _LANE)             # taps merged before lane padding
    k2 = _round_up(9 * cout, _LANE)
    k_max = max(k1, k2, 0 if identity_skip else cin_p)
    tile_m = _choose_tile_m(m, k_max, cout_p)
    m_pad = _round_up(m, tile_m)

    x_bf16 = x.astype(jnp.bfloat16)

    # ---- stage 1: conv3x3 + BN + ReLU ----
    p1 = _im2col_3x3(x_bf16, m_pad, k1)                             # (M_pad, K1) bf16
    w1 = _pack_w3x3(params["w1"], k1, cout_p)                       # (K1, Cout_p) bf16
    g1, b1 = _pad_gb(params["g1"], params["b1"], cout_p)
    y1, st1 = _conv_stats(p1, w1, tile_m, m)
    sc1, sh1 = _finalize_bn(st1, g1, b1, m, tile_m)
    h1 = _apply_bn(y1, sc1, sh1, tile_m=tile_m, fuse_relu=True,
                   out_dtype=jnp.bfloat16)                          # (M_pad, Cout_p) bf16

    # ---- skip branch ----
    if identity_skip:
        # cin == cout -> pad raw input slab to the stage-2 output channel padding.
        x_slab = _pad_rows(jnp.pad(x_bf16.reshape(m, cin),
                                   ((0, 0), (0, cout_p - cin))), m_pad)
        skip_kwargs = dict(skip=x_slab)
    else:
        # TODO(synk): fold wsk into the stage-1 RHS ([w1 | wsk] widened matmul) to
        #             avoid this extra pass over the input slab.
        xs = _pad_rows(jnp.pad(x_bf16.reshape(m, cin),
                               ((0, 0), (0, cin_p - cin))), m_pad)
        wsk = _pack_w1x1(params["wsk"], cin_p, cout_p)
        gsk, bsk = _pad_gb(params["gsk"], params["bsk"], cout_p)
        ysk, stsk = _conv_stats(xs, wsk, tile_m, m)                 # 1x1 conv (K = Cin_p)
        scsk, shsk = _finalize_bn(stsk, gsk, bsk, m, tile_m)
        skip_kwargs = dict(skip=ysk, sk_scale=scsk, sk_shift=shsk)

    # ---- stage 2: conv3x3 + BN + skip-add + ReLU (fused epilogue) ----
    h1_nhwc = h1[:m, :cout].reshape(n, h, w, cout)   # drop channel pad before re-im2col
    p2 = _im2col_3x3(h1_nhwc, m_pad, k2)
    w2 = _pack_w3x3(params["w2"], k2, cout_p)
    g2, b2 = _pad_gb(params["g2"], params["b2"], cout_p)
    y2, st2 = _conv_stats(p2, w2, tile_m, m)
    sc2, sh2 = _finalize_bn(st2, g2, b2, m, tile_m)
    out_slab = _apply_bn(y2, sc2, sh2, tile_m=tile_m, fuse_relu=True,
                         out_dtype=jnp.float32, **skip_kwargs)

    # TODO(synk): NHWC consumers can take out_slab[:m, :cout] directly and skip the
    #             final transpose pass.
    out = out_slab[:m, :cout].reshape(n, h, w, cout)
    return jnp.transpose(out, (0, 3, 1, 2))                         # NHWC -> NCHW


# --------------------------- pure-JAX reference ----------------------------- #

def _bn_train_ref(y, g, b):
    mu = jnp.mean(y, axis=(0, 1, 2), keepdims=True)
    var = jnp.mean((y - mu) ** 2, axis=(0, 1, 2), keepdims=True)
    return ((y - mu) * jax.lax.rsqrt(var + _BN_EPS) * g.reshape(1, 1, 1, -1)
            + b.reshape(1, 1, 1, -1))


def resblock_reference(x_nchw, params):
    x = jnp.transpose(x_nchw, (0, 2, 3, 1)).astype(jnp.float32)
    cin = x.shape[-1]
    cout = params["w1"].shape[-1]
    dn = ("NHWC", "HWIO", "NHWC")

    def conv(a, w, p):
        return jax.lax.conv_general_dilated(a, w, (1, 1), [(p, p), (p, p)],
                                            dimension_numbers=dn)

    h = jax.nn.relu(_bn_train_ref(conv(x, params["w1"], 1), params["g1"], params["b1"]))
    y = _bn_train_ref(conv(h, params["w2"], 1), params["g2"], params["b2"])
    if cin == cout and "wsk" not in params:
        y = y + x
    else:
        s = _bn_train_ref(conv(x, params["wsk"].reshape(1, 1, cin, cout), 0),
                          params["gsk"], params["bsk"])
        y = y + s
    return jnp.transpose(jax.nn.relu(y), (0, 3, 1, 2))


# ---------------------------------- main ------------------------------------ #

def _check_close(out, ref, name, atol=5e-2, rtol=5e-2):
    diff = jnp.abs(out - ref)
    excess = float(jnp.max(diff - (atol + rtol * jnp.abs(ref))))
    if excess > 0.0:
        raise AssertionError(
            f"{name}: mismatch vs reference (max abs err {float(jnp.max(diff)):.4e}, "
            f"excess over tol {excess:.4e})")


if __name__ == "__main__":
    key = jax.random.PRNGKey(0)
    N, Cin, Cout, H, W = 2, 4, 4, 16, 16
    ks = jax.random.split(key, 5)
    x = jax.random.normal(ks[0], (N, Cin, H, W), jnp.float32)

    # PyTorch BN init: gamma=1, beta=0; conv weights random, no bias.
    params = {
        "w1": 0.1 * jax.random.normal(ks[1], (3, 3, Cin, Cout), jnp.float32),
        "g1": jnp.ones((1, Cout), jnp.float32),
        "b1": jnp.zeros((1, Cout), jnp.float32),
        "w2": 0.1 * jax.random.normal(ks[2], (3, 3, Cout, Cout), jnp.float32),
        "g2": jnp.ones((1, Cout), jnp.float32),
        "b2": jnp.zeros((1, Cout), jnp.float32),
    }

    out = jax.block_until_ready(resblock_forward(x, params))
    ref = jax.block_until_ready(resblock_reference(x, params))
    assert out.shape == (N, Cout, H, W), out.shape
    _check_close(out, ref, "identity-skip")

    # Projection-skip variant (inchannels != outchannels -> 1x1 conv + BN skip).
    Cout2 = 8
    kp = jax.random.split(ks[3], 3)
    params_p = {
        "w1": 0.1 * jax.random.normal(kp[0], (3, 3, Cin, Cout2), jnp.float32),
        "g1": jnp.ones((1, Cout2), jnp.float32),
        "b1": jnp.zeros((1, Cout2), jnp.float32),
        "w2": 0.1 * jax.random.normal(kp[1], (3, 3, Cout2, Cout2), jnp.float32),
        "g2": jnp.ones((1, Cout2), jnp.float32),
        "b2": jnp.zeros((1, Cout2), jnp.float32),
        "wsk": 0.1 * jax.random.normal(kp[2], (Cin, Cout2), jnp.float32),
        "gsk": jnp.ones((1, Cout2), jnp.float32),
        "bsk": jnp.zeros((1, Cout2), jnp.float32),
    }
    out_p = jax.block_until_ready(resblock_forward(x, params_p))
    ref_p = jax.block_until_ready(resblock_reference(x, params_p))
    assert out_p.shape == (N, Cout2, H, W), out_p.shape
    _check_close(out_p, ref_p, "projection-skip")

    print("KERNEL_OK")
</pallas_src>

<mosaic_0001>
module attributes {stable_mosaic.version = 11 : i64} {
  func.func @kernel(%arg0: i32, %arg1: memref<256x128xbf16, #tpu.memory_space<vmem>>, %arg2: memref<128x128xbf16, #tpu.memory_space<vmem>>, %arg3: memref<256x128xbf16, #tpu.memory_space<vmem>>, %arg4: memref<1x2x128xf32, #tpu.memory_space<vmem>>) attributes {dimension_semantics = [#tpu.dimension_semantics<parallel>], iteration_bounds = array<i64: 2>, scalar_prefetch = 0 : i64, scratch_operands = 0 : i64, tpu.core_type = #tpu.core_type<tc>, window_params = [{transform_indices = @transform_0, window_bounds = array<i64: 256, 128>}, {pipeline_mode = #tpu.pipeline_mode<synchronous>, transform_indices = @transform_1, window_bounds = array<i64: 128, 128>}, {transform_indices = @transform_2, window_bounds = array<i64: 256, 128>}, {transform_indices = @transform_3, window_bounds = array<i64: 1, 2, 128>}]} {
    %c0 = arith.constant 0 : index
    %c0_0 = arith.constant 0 : index
    %0 = vector.load %arg1[%c0, %c0_0] : memref<256x128xbf16, #tpu.memory_space<vmem>>, vector<256x128xbf16>
    %c0_1 = arith.constant 0 : index
    %c0_2 = arith.constant 0 : index
    %1 = vector.load %arg2[%c0_1, %c0_2] : memref<128x128xbf16, #tpu.memory_space<vmem>>, vector<128x128xbf16>
    %cst = arith.constant dense<0.000000e+00> : vector<256x128xf32>
    %2 = tpu.matmul %0, %1, %cst {dimension_numbers = #tpu.dot_dimension_numbers<[1], [0], [0], [1], [0, 0, 1, 1], [], []>} : vector<256x128xbf16>, vector<128x128xbf16>, vector<256x128xf32> -> vector<256x128xf32>
    %3 = arith.truncf %2 : vector<256x128xf32> to vector<256x128xbf16>
    %c0_3 = arith.constant 0 : index
    %c0_4 = arith.constant 0 : index
    %4 = vector.load %arg3[%c0_3, %c0_4] : memref<256x128xbf16, #tpu.memory_space<vmem>>, vector<256x128xbf16>
    tpu.vector_store %arg3[%c0_3, %c0_4], %3 {strides = array<i32>} : memref<256x128xbf16, #tpu.memory_space<vmem>>, vector<256x128xbf16>,
    %c256_i32 = arith.constant 256 : i32
    %5 = arith.muli %arg0, %c256_i32 : i32
    %c512_i32 = arith.constant 512 : i32
    %6 = arith.subi %c512_i32, %5 : i32
    %c256_i32_5 = arith.constant 256 : i32
    %7 = arith.minsi %6, %c256_i32_5 : i32
    %8 = arith.sitofp %7 : i32 to f32
    %cst_6 = arith.constant 2.560000e+02 : f32
    %9 = arith.subf %cst_6, %8 : f32
    %cst_7 = arith.constant dense<0.000000e+00> : vector<128xf32>
    %10 = vector.multi_reduction <add>, %2, %cst_7 [0] : vector<256x128xf32> to vector<128xf32>
    %11 = vector.shape_cast %10 : vector<128xf32> to vector<1x128xf32>
    %12 = vector.broadcast %8 : f32 to vector<1x128xf32>
    %13 = arith.divf %11, %12 : vector<1x128xf32>
    %14 = vector.broadcast %13 : vector<1x128xf32> to vector<256x128xf32>
    %15 = arith.subf %2, %14 : vector<256x128xf32>
    %16 = arith.mulf %15, %15 : vector<256x128xf32>
    %cst_8 = arith.constant dense<0.000000e+00> : vector<128xf32>
    %17 = vector.multi_reduction <add>, %16, %cst_8 [0] : vector<256x128xf32> to vector<128xf32>
    %18 = vector.shape_cast %17 : vector<128xf32> to vector<1x128xf32>
    %19 = vector.broadcast %9 : f32 to vector<1x128xf32>
    %20 = arith.mulf %19, %13 : vector<1x128xf32>
    %21 = arith.mulf %20, %13 : vector<1x128xf32>
    %22 = arith.subf %18, %21 : vector<1x128xf32>
    %23 = tpu.concatenate %11, %22 in 0 : vector<1x128xf32>, vector<1x128xf32> -> vector<2x128xf32>
    %24 = vector.shape_cast %23 : vector<2x128xf32> to vector<1x2x128xf32>
    %c0_9 = arith.constant 0 : index
    %c0_10 = arith.constant 0 : index
    %c0_11 = arith.constant 0 : index
    %25 = vector.load %arg4[%c0_9, %c0_10, %c0_11] : memref<1x2x128xf32, #tpu.memory_space<vmem>>, vector<1x2x128xf32>
    tpu.vector_store %arg4[%c0_9, %c0_10, %c0_11], %24 {strides = array<i32>} : memref<1x2x128xf32, #tpu.memory_space<vmem>>, vector<1x2x128xf32>,
    return
  }
  func.func @transform_0(%arg0: i32) -> (i32, i32) {
    %c0_i32 = arith.constant 0 : i32
    %c0_i32_0 = arith.constant 0 : i32
    return %arg0, %c0_i32 : i32, i32
  }
  func.func @transform_1(%arg0: i32) -> (i32, i32) {
    %c0_i32 = arith.constant 0 : i32
    %c0_i32_0 = arith.constant 0 : i32
    %c0_i32_1 = arith.constant 0 : i32
    return %c0_i32, %c0_i32_0 : i32, i32
  }
  func.func @transform_2(%arg0: i32) -> (i32, i32) {
    %c0_i32 = arith.constant 0 : i32
    %c0_i32_0 = arith.constant 0 : i32
    return %arg0, %c0_i32 : i32, i32
  }
  func.func @transform_3(%arg0: i32) -> (i32, i32, i32) {
    %c0_i32 = arith.constant 0 : i32
    %c0_i32_0 = arith.constant 0 : i32
    %c0_i32_1 = arith.constant 0 : i32
    return %arg0, %c0_i32, %c0_i32_0 : i32, i32, i32
  }
}

module attributes {stable_mosaic.version = 11 : i64} {
  func.func @kernel(%arg0: i32, %arg1: memref<256x128xbf16, #tpu.memory_space<vmem>>, %arg2: memref<1x128xf32, #tpu.memory_space<vmem>>, %arg3: memref<1x128xf32, #tpu.memory_space<vmem>>, %arg4: memref<256x128xbf16, #tpu.memory_space<vmem>>) attributes {dimension_semantics = [#tpu.dimension_semantics<parallel>], iteration_bounds = array<i64: 2>, scalar_prefetch = 0 : i64, scratch_operands = 0 : i64, tpu.core_type = #tpu.core_type<tc>, window_params = [{transform_indices = @transform_0, window_bounds = array<i64: 256, 128>}, {pipeline_mode = #tpu.pipeline_mode<synchronous>, transform_indices = @transform_1, window_bounds = array<i64: 1, 128>}, {pipeline_mode = #tpu.pipeline_mode<synchronous>, transform_indices = @transform_2, window_bounds = array<i64: 1, 128>}, {transform_indices = @transform_3, window_bounds = array<i64: 256, 128>}]} {
    %c0 = arith.constant 0 : index
    %c0_0 = arith.constant 0 : index
    %0 = vector.load %arg1[%c0, %c0_0] : memref<256x128xbf16, #tpu.memory_space<vmem>>, vector<256x128xbf16>
    %1 = arith.extf %0 : vector<256x128xbf16> to vector<256x128xf32>
    %c0_1 = arith.constant 0 : index
    %c0_2 = arith.constant 0 : index
    %2 = vector.load %arg2[%c0_1, %c0_2] : memref<1x128xf32, #tpu.memory_space<vmem>>, vector<1x128xf32>
    %3 = vector.broadcast %2 : vector<1x128xf32> to vector<256x128xf32>
    %4 = arith.mulf %1, %3 : vector<256x128xf32>
    %c0_3 = arith.constant 0 : index
    %c0_4 = arith.constant 0 : index
    %5 = vector.load %arg3[%c0_3, %c0_4] : memref<1x128xf32, #tpu.memory_space<vmem>>, vector<1x128xf32>
    %6 = vector.broadcast %5 : vector<1x128xf32> to vector<256x128xf32>
    %7 = arith.addf %4, %6 : vector<256x128xf32>
    %cst = arith.constant 0.000000e+00 : f32
    %8 = vector.broadcast %cst : f32 to vector<256x128xf32>
    %9 = arith.maximumf %7, %8 : vector<256x128xf32>
    %10 = arith.truncf %9 : vector<256x128xf32> to vector<256x128xbf16>
    %c0_5 = arith.constant 0 : index
    %c0_6 = arith.constant 0 : index
    %11 = vector.load %arg4[%c0_5, %c0_6] : memref<256x128xbf16, #tpu.memory_space<vmem>>, vector<256x128xbf16>
    tpu.vector_store %arg4[%c0_5, %c0_6], %10 {strides = array<i32>} : memref<256x128xbf16, #tpu.memory_space<vmem>>, vector<256x128xbf16>,
    return
  }
  func.func @transform_0(%arg0: i32) -> (i32, i32) {
    %c0_i32 = arith.constant 0 : i32
    %c0_i32_0 = arith.constant 0 : i32
    return %arg0, %c0_i32 : i32, i32
  }
  func.func @transform_1(%arg0: i32) -> (i32, i32) {
    %c0_i32 = arith.constant 0 : i32
    %c0_i32_0 = arith.constant 0 : i32
    %c0_i32_1 = arith.constant 0 : i32
    return %c0_i32, %c0_i32_0 : i32, i32
  }
  func.func @transform_2(%arg0: i32) -> (i32, i32) {
    %c0_i32 = arith.constant 0 : i32
    %c0_i32_0 = arith.constant 0 : i32
    %c0_i32_1 = arith.constant 0 : i32
    return %c0_i32, %c0_i32_0 : i32, i32
  }
  func.func @transform_3(%arg0: i32) -> (i32, i32) {
    %c0_i32 = arith.constant 0 : i32
    %c0_i32_0 = arith.constant 0 : i32
    return %arg0, %c0_i32 : i32, i32
  }
}

module attributes {stable_mosaic.version = 11 : i64} {
  func.func @kernel(%arg0: i32, %arg1: memref<256x128xbf16, #tpu.memory_space<vmem>>, %arg2: memref<1x128xf32, #tpu.memory_space<vmem>>, %arg3: memref<1x128xf32, #tpu.memory_space<vmem>>, %arg4: memref<256x128xbf16, #tpu.memory_space<vmem>>, %arg5: memref<256x128xf32, #tpu.memory_space<vmem>>) attributes {dimension_semantics = [#tpu.dimension_semantics<parallel>], iteration_bounds = array<i64: 2>, scalar_prefetch = 0 : i64, scratch_operands = 0 : i64, tpu.core_type = #tpu.core_type<tc>, window_params = [{transform_indices = @transform_0, window_bounds = array<i64: 256, 128>}, {pipeline_mode = #tpu.pipeline_mode<synchronous>, transform_indices = @transform_1, window_bounds = array<i64: 1, 128>}, {pipeline_mode = #tpu.pipeline_mode<synchronous>, transform_indices = @transform_2, window_bounds = array<i64: 1, 128>}, {transform_indices = @transform_3, window_bounds = array<i64: 256, 128>}, {transform_indices = @transform_4, window_bounds = array<i64: 256, 128>}]} {
    %c0 = arith.constant 0 : index
    %c0_0 = arith.constant 0 : index
    %0 = vector.load %arg1[%c0, %c0_0] : memref<256x128xbf16, #tpu.memory_space<vmem>>, vector<256x128xbf16>
    %1 = arith.extf %0 : vector<256x128xbf16> to vector<256x128xf32>
    %c0_1 = arith.constant 0 : index
    %c0_2 = arith.constant 0 : index
    %2 = vector.load %arg2[%c0_1, %c0_2] : memref<1x128xf32, #tpu.memory_space<vmem>>, vector<1x128xf32>
    %3 = vector.broadcast %2 : vector<1x128xf32> to vector<256x128xf32>
    %4 = arith.mulf %1, %3 : vector<256x128xf32>
    %c0_3 = arith.constant 0 : index
    %c0_4 = arith.constant 0 : index
    %5 = vector.load %arg3[%c0_3, %c0_4] : memref<1x128xf32, #tpu.memory_space<vmem>>, vector<1x128xf32>
    %6 = vector.broadcast %5 : vector<1x128xf32> to vector<256x128xf32>
    %7 = arith.addf %4, %6 : vector<256x128xf32>
    %c0_5 = arith.constant 0 : index
    %c0_6 = arith.constant 0 : index
    %8 = vector.load %arg4[%c0_5, %c0_6] : memref<256x128xbf16, #tpu.memory_space<vmem>>, vector<256x128xbf16>
    %9 = arith.extf %8 : vector<256x128xbf16> to vector<256x128xf32>
    %10 = arith.addf %7, %9 : vector<256x128xf32>
    %cst = arith.constant 0.000000e+00 : f32
    %11 = vector.broadcast %cst : f32 to vector<256x128xf32>
    %12 = arith.maximumf %10, %11 : vector<256x128xf32>
    %c0_7 = arith.constant 0 : index
    %c0_8 = arith.constant 0 : index
    %13 = vector.load %arg5[%c0_7, %c0_8] : memref<256x128xf32, #tpu.memory_space<vmem>>, vector<256x128xf32>
    tpu.vector_store %arg5[%c0_7, %c0_8], %12 {strides = array<i32>} : memref<256x128xf32, #tpu.memory_space<vmem>>, vector<256x128xf32>,
    return
  }
  func.func @transform_0(%arg0: i32) -> (i32, i32) {
    %c0_i32 = arith.constant 0 : i32
    %c0_i32_0 = arith.constant 0 : i32
    return %arg0, %c0_i32 : i32, i32
  }
  func.func @transform_1(%arg0: i32) -> (i32, i32) {
    %c0_i32 = arith.constant 0 : i32
    %c0_i32_0 = arith.constant 0 : i32
    %c0_i32_1 = arith.constant 0 : i32
    return %c0_i32, %c0_i32_0 : i32, i32
  }
  func.func @transform_2(%arg0: i32) -> (i32, i32) {
    %c0_i32 = arith.constant 0 : i32
    %c0_i32_0 = arith.constant 0 : i32
    %c0_i32_1 = arith.constant 0 : i32
    return %c0_i32, %c0_i32_0 : i32, i32
  }
  func.func @transform_3(%arg0: i32) -> (i32, i32) {
    %c0_i32 = arith.constant 0 : i32
    %c0_i32_0 = arith.constant 0 : i32
    return %arg0, %c0_i32 : i32, i32
  }
  func.func @transform_4(%arg0: i32) -> (i32, i32) {
    %c0_i32 = arith.constant 0 : i32
    %c0_i32_0 = arith.constant 0 : i32
    return %arg0, %c0_i32 : i32, i32
  }
}

</mosaic_0001>

<llo_original>
// kernel: resblock_forward.5
$region0: #{resblock_forward.5}
  #allocation0 [shape = 'u32[]', space=smem, size = 0x4, offset = 0x4, fixed_abs, tag = 'smem constant byte address 0x4 - core index']
  #allocation1 [shape = 'u32[144,128]{1,0:T(1,128)}', space=vmem, size = 0x12000, scoped, tag = 'internal scratch']
  %s0 = inlined_call_operand.vmem [shape: bf16[512,128], index: 0, kind: input, shape index: {}]
  %s1 = inlined_call_operand.vmem [shape: f32[1,128], index: 1, kind: input, shape index: {}]
  %s2 = inlined_call_operand.vmem [shape: f32[1,128], index: 2, kind: input, shape index: {}]
  %s3 = inlined_call_operand.vmem [shape: bf16[512,128], index: 3, kind: output, shape index: {}]
  %s4 = sld [smem:[#allocation0]]
  $region45: #{resblock_forward.5} parent=0
    _
  %s6 = ssub.s32 1, %s4
  %s7 = scalar_select 0, %s6, %s4
  loop: start=0, step=1, limit=4
  $region2: #{resblock_forward.5} parent=0 // loop_pre_header
    _
  $region3: #{resblock_forward.5} parent=0 // loop_header
    %s9 = sphi 0, %s13
    %p10 = scmp.ge.s32.totalorder %s9, 4
    %s19 = sphi 0, %s21
    %s22 = sphi 0, %s19
    %s23 = sphi 0, %s22
    %s39 = sphi 0, %s23
    %s43 = sphi 0, %s43
    %s45 = sphi 0, %s43
    %s46 = sphi 0, %s45
    %s60 = sphi 0, %s46
    %s64 = sphi 0, %s64
    %s66 = sphi 0, %s64
    %s67 = sphi 0, %s66
    %s81 = sphi 0, %s67
    %s87 = sphi 0, %s89
    %s90 = sphi 0, %s87
    %s91 = sphi 0, %s90
    %s107 = sphi 0, %s91
  $region4: #{resblock_forward.5} parent=0 // loop_header_branch
    %12 = sbr.rel (%p10) target = $region8
  $region5: #{resblock_forward.5} parent=0 // loop_body
    %s14 = ssub.s32 %s9, 1
    %s15 = ssub.s32 %s9, 2
    %s16 = sadd.s32 %s9, 1
    %s17 = ssub.s32 %s9, %s16
    %p18 = scmp.eq.s32.totalorder %s17, 0
    %s20 = sadd.s32 %s19, 1
    %s21 = scalar_select %p18, %s19, %s20
    %p24 = pneg %p18
    %p25 = scmp.eq.s32.totalorder %s9, 1
    %p26 = por %p24, %p25
    %p27 = scmp.ne.s32.totalorder %s19, %s22
    %p28 = scmp.eq.s32.totalorder %s9, 0
    %p29 = por %p27, %p28
    %p30 = scmp.ne.s32.totalorder %s19, %s22
    %p31 = scmp.eq.s32.totalorder %s14, 1
    %p32 = por %p30, %p31
    %p33 = scmp.ne.s32.totalorder %s22, %s23
    %p34 = scmp.eq.s32.totalorder %s14, 0
    %p35 = por %p33, %p34
    %p36 = scmp.ne.s32.totalorder %s22, %s23
    %p37 = scmp.eq.s32.totalorder %s15, 1
    %p38 = por %p36, %p37
    %p40 = scmp.ne.s32.totalorder %s23, %s39
    %p41 = scmp.eq.s32.totalorder %s15, 0
    %p42 = por %p40, %p41
    %s44 = sadd.s32 %s43, 1
    %p47 = scmp.eq.s32.totalorder %s9, 1
    %p48 = scmp.ne.s32.totalorder %s43, %s45
    %p49 = scmp.eq.s32.totalorder %s9, 0
    %p50 = por %p48, %p49
    %p51 = scmp.ne.s32.totalorder %s43, %s45
    %p52 = scmp.eq.s32.totalorder %s14, 1
    %p53 = por %p51, %p52
    %p54 = scmp.ne.s32.totalorder %s45, %s46
    %p55 = scmp.eq.s32.totalorder %s14, 0
    %p56 = por %p54, %p55
    %p57 = scmp.ne.s32.totalorder %s45, %s46
    %p58 = scmp.eq.s32.totalorder %s15, 1
    %p59 = por %p57, %p58
    %p61 = scmp.ne.s32.totalorder %s46, %s60
    %p62 = scmp.eq.s32.totalorder %s15, 0
    %p63 = por %p61, %p62
    %s65 = sadd.s32 %s64, 1
    %p68 = scmp.eq.s32.totalorder %s9, 1
    %p69 = scmp.ne.s32.totalorder %s64, %s66
    %p70 = scmp.eq.s32.totalorder %s9, 0
    %p71 = por %p69, %p70
    %p72 = scmp.ne.s32.totalorder %s64, %s66
    %p73 = scmp.eq.s32.totalorder %s14, 1
    %p74 = por %p72, %p73
    %p75 = scmp.ne.s32.totalorder %s66, %s67
    %p76 = scmp.eq.s32.totalorder %s14, 0
    %p77 = por %p75, %p76
    %p78 = scmp.ne.s32.totalorder %s66, %s67
    %p79 = scmp.eq.s32.totalorder %s15, 1
    %p80 = por %p78, %p79
    %p82 = scmp.ne.s32.totalorder %s67, %s81
    %p83 = scmp.eq.s32.totalorder %s15, 0
    %p84 = por %p82, %p83
    %s85 = ssub.s32 %s9, %s16
    %p86 = scmp.eq.s32.totalorder %s85, 0
    %s88 = sadd.s32 %s87, 1
    %s89 = scalar_select %p86, %s87, %s88
    %p92 = pneg %p86
    %p93 = scmp.eq.s32.totalorder %s9, 1
    %p94 = por %p92, %p93
    %p95 = scmp.ne.s32.totalorder %s87, %s90
    %p96 = scmp.eq.s32.totalorder %s9, 0
    %p97 = por %p95, %p96
    %p98 = scmp.ne.s32.totalorder %s87, %s90
    %p99 = scmp.eq.s32.totalorder %s14, 1
    %p100 = por %p98, %p99
    %p101 = scmp.ne.s32.totalorder %s90, %s91
    %p102 = scmp.eq.s32.totalorder %s14, 0
    %p103 = por %p101, %p102
    %p104 = scmp.ne.s32.totalorder %s90, %s91
    %p105 = scmp.eq.s32.totalorder %s15, 1
    %p106 = por %p104, %p105
    %p108 = scmp.ne.s32.totalorder %s91, %s107
    %p109 = scmp.eq.s32.totalorder %s15, 0
    %p110 = por %p108, %p109
    %p111 = scmp.le.s32.totalorder 1, %s9
    %p112 = scmp.lt.s32.totalorder %s9, 3
    %p113 = pnand %p111, %p112
    %p114 = pneg %p113
    // Predicated region
    $region9: #{resblock_forward.5} parent=5 // pred_check
      _
    $region10: #{resblock_forward.5} parent=5 // pred_check_branch
      %116 = sbr.rel (%p113) target = $region12
    $region11: #{resblock_forward.5} parent=5 // pred_region
      %s117 = ssub.s32 %s9, 1
      // Predicated region
      $region13: #{resblock_forward.5} parent=11 // pred_check
        %p118 = pneg %p56
      $region14: #{resblock_forward.5} parent=11 // pred_check_branch
        %120 = sbr.rel (%p118) target = $region16
      $region15: #{resblock_forward.5} parent=11 // pred_region
        _
      $region16: #{resblock_forward.5} parent=11 // pred_fallthru
        _
      // Predicated region
      $region17: #{resblock_forward.5} parent=11 // pred_check
        %p121 = pneg %p77
      $region18: #{resblock_forward.5} parent=11 // pred_check_branch
        %123 = sbr.rel (%p121) target = $region20
      $region19: #{resblock_forward.5} parent=11 // pred_region
        _
      $region20: #{resblock_forward.5} parent=11 // pred_fallthru
        _
    $region12: #{resblock_forward.5} parent=5 // pred_fallthru
      _
    %p124 = scmp.lt.s32.totalorder %s9, 2
    // Predicated region
    $region21: #{resblock_forward.5} parent=5 // pred_check
      %p125 = pneg %p124
    $region22: #{resblock_forward.5} parent=5 // pred_check_branch
      %127 = sbr.rel (%p125) target = $region24
    $region23: #{resblock_forward.5} parent=5 // pred_region
      // Predicated region
      $region25: #{resblock_forward.5} parent=23 // pred_check
        %p128 = pneg %p29
      $region26: #{resblock_forward.5} parent=23 // pred_check_branch
        %130 = sbr.rel (%p128) target = $region28
      $region27: #{resblock_forward.5} parent=23 // pred_region
        %s131 = smul.u32 32, %s9
        %p132 = scmp.lt.s32.totalorder %s131, 63
        %s133 = scalar_select %p132, %s131, 63
        %s134 = smul.addr %s133, 4
        %s135 = scalar_lea.vmem %s0, %s134
        %s136 = smul.u32 32, %s9
      $region28: #{resblock_forward.5} parent=23 // pred_fallthru
        _
    $region24: #{resblock_forward.5} parent=5 // pred_fallthru
      _
    %p137 = scmp.le.s32.totalorder 1, %s9
    %p138 = scmp.lt.s32.totalorder %s9, 3
    %p139 = pnand %p137, %p138
    %p140 = pneg %p139
    // Predicated region
    $region29: #{resblock_forward.5} parent=5 // pred_check
      _
    $region30: #{resblock_forward.5} parent=5 // pred_check_branch
      %142 = sbr.rel (%p139) target = $region32
    $region31: #{resblock_forward.5} parent=5 // pred_region
      %s143 = ssub.s32 %s9, 1
      %s144 = smul.u32 32, %s14
      %p145 = scmp.lt.s32.totalorder %s144, 63
      %s146 = scalar_select %p145, %s144, 63
      %s147 = smul.addr %s146, 4
      %s148 = scalar_lea.vmem %s0, %s147
      %p149 = pneg %p35
      %p150 = pneg %p32
      %p151 = pneg %p56
      %p152 = pneg %p53
      %p153 = pneg %p77
      %p154 = pneg %p74
      %p155 = pneg %p103
      %p156 = pneg %p100
      %s157 = smul.u32 32, %s14
      %p158 = scmp.lt.s32.totalorder %s157, 63
      %s159 = scalar_select %p158, %s157, 63
      %s160 = smul.addr %s159, 4
      %s161 = scalar_lea.vmem %s3, %s160
      %s162 = smul.u32 32, %s14
      %p163 = scmp.lt.s32.totalorder %s162, 63
      %s164 = scalar_select %p163, %s162, 63
      %s165 = smul.addr %s164, 4
      %s166 = scalar_lea.vmem %s0, %s165
      %s167 = smul.u32 32, %s14
      %s168 = smul.u32 32, %s14
      %p169 = scmp.lt.s32.totalorder %s168, 63
      %s170 = scalar_select %p169, %s168, 63
      %s171 = smul.addr %s170, 4
      %s172 = scalar_lea.vmem %s3, %s171
      %s173 = smul.u32 32, %s14
      %v174 = vld [vmem:[%s166] sm:$0xf]
      %v175 = vld [vmem:[%s166 + $0x4] sm:$0xf]
      %v176 = vld [vmem:[%s166 + $0x8] sm:$0xf]
      %v177 = vld [vmem:[%s166 + $0xc] sm:$0xf]
      %v178 = vld [vmem:[%s166 + $0x10] sm:$0xf]
      %v179 = vld [vmem:[%s166 + $0x14] sm:$0xf]
      %v180 = vld [vmem:[%s166 + $0x18] sm:$0xf]
      %v181 = vld [vmem:[%s166 + $0x1c] sm:$0xf]
      %v182 = vld [vmem:[%s166 + $0x20] sm:$0xf]
      %v183 = vld [vmem:[%s166 + $0x24] sm:$0xf]
      %v184 = vld [vmem:[%s166 + $0x28] sm:$0xf]
      %v185 = vld [vmem:[%s166 + $0x2c] sm:$0xf]
      %v186 = vld [vmem:[%s166 + $0x30] sm:$0xf]
      %v187 = vld [vmem:[%s166 + $0x34] sm:$0xf]
      %v188 = vld [vmem:[%s166 + $0x38] sm:$0xf]
      %v189 = vld [vmem:[%s166 + $0x3c] sm:$0xf]
      %v190 = vld [vmem:[%s166 + $0x40] sm:$0xf]
      %v191 = vld [vmem:[%s166 + $0x44] sm:$0xf]
      %v192 = vld [vmem:[%s166 + $0x48] sm:$0xf]
      %v193 = vld [vmem:[%s166 + $0x4c] sm:$0xf]
      %v194 = vld [vmem:[%s166 + $0x50] sm:$0xf]
      %v195 = vld [vmem:[%s166 + $0x54] sm:$0xf]
      %v196 = vld [vmem:[%s166 + $0x58] sm:$0xf]
      %v197 = vld [vmem:[%s166 + $0x5c] sm:$0xf]
      %v198 = vld [vmem:[%s166 + $0x60] sm:$0xf]
      %v199 = vld [vmem:[%s166 + $0x64] sm:$0xf]
      %v200 = vld [vmem:[%s166 + $0x68] sm:$0xf]
      %v201 = vld [vmem:[%s166 + $0x6c] sm:$0xf]
      %v202 = vld [vmem:[%s166 + $0x70] sm:$0xf]
      %v203 = vld [vmem:[%s166 + $0x74] sm:$0xf]
      %v204 = vld [vmem:[%s166 + $0x78] sm:$0xf]
      %v205 = vld [vmem:[%s166 + $0x7c] sm:$0xf]
      %v206 = vunpack.c.l.bf16 %v174
      %v207 = vunpack.c.l.bf16 %v175
      %v208 = vunpack.c.l.bf16 %v176
      %v209 = vunpack.c.l.bf16 %v177
      %v210 = vunpack.c.l.bf16 %v178
      %v211 = vunpack.c.l.bf16 %v179
      %v212 = vunpack.c.l.bf16 %v180
      %v213 = vunpack.c.l.bf16 %v181
      %v214 = vunpack.c.l.bf16 %v182
      %v215 = vunpack.c.l.bf16 %v183
      %v216 = vunpack.c.l.bf16 %v184
      %v217 = vunpack.c.l.bf16 %v185
      %v218 = vunpack.c.l.bf16 %v186
      %v219 = vunpack.c.l.bf16 %v187
      %v220 = vunpack.c.l.bf16 %v188
      %v221 = vunpack.c.l.bf16 %v189
      %v222 = vunpack.c.l.bf16 %v190
      %v223 = vunpack.c.l.bf16 %v191
      %v224 = vunpack.c.l.bf16 %v192
      %v225 = vunpack.c.l.bf16 %v193
      %v226 = vunpack.c.l.bf16 %v194
      %v227 = vunpack.c.l.bf16 %v195
      %v228 = vunpack.c.l.bf16 %v196
      %v229 = vunpack.c.l.bf16 %v197
      %v230 = vunpack.c.l.bf16 %v198
      %v231 = vunpack.c.l.bf16 %v199
      %v232 = vunpack.c.l.bf16 %v200
      %v233 = vunpack.c.l.bf16 %v201
      %v234 = vunpack.c.l.bf16 %v202
      %v235 = vunpack.c.l.bf16 %v203
      %v236 = vunpack.c.l.bf16 %v204
      %v237 = vunpack.c.l.bf16 %v205
      %v238 = vld [vmem:[%s1] sm:$0x1]
      %v240 = vlaneseq
      %v241 = vshrl.u32 %v240, 7
      %v242 = vsub.s32 0, %v241
      %v243 = vrot.slane %v238, %v242
      %v245 = vmul.f32 %v206, %v243
      %v246 = vmul.f32 %v207, %v243
      %v247 = vmul.f32 %v208, %v243
      %v248 = vmul.f32 %v209, %v243
      %v249 = vmul.f32 %v210, %v243
      %v250 = vmul.f32 %v211, %v243
      %v251 = vmul.f32 %v212, %v243
      %v252 = vmul.f32 %v213, %v243
      %v253 = vmul.f32 %v214, %v243
      %v254 = vmul.f32 %v215, %v243
      %v255 = vmul.f32 %v216, %v243
      %v256 = vmul.f32 %v217, %v243
      %v257 = vmul.f32 %v218, %v243
      %v258 = vmul.f32 %v219, %v243
      %v259 = vmul.f32 %v220, %v243
      %v260 = vmul.f32 %v221, %v243
      %v261 = vmul.f32 %v222, %v243
      %v262 = vmul.f32 %v223, %v243
      %v263 = vmul.f32 %v224, %v243
      %v264 = vmul.f32 %v225, %v243
      %v265 = vmul.f32 %v226, %v243
      %v266 = vmul.f32 %v227, %v243
      %v267 = vmul.f32 %v228, %v243
      %v268 = vmul.f32 %v229, %v243
      %v269 = vmul.f32 %v230, %v243
      %v270 = vmul.f32 %v231, %v243
      %v271 = vmul.f32 %v232, %v243
      %v272 = vmul.f32 %v233, %v243
      %v273 = vmul.f32 %v234, %v243
      %v274 = vmul.f32 %v235, %v243
      %v275 = vmul.f32 %v236, %v243
      %v276 = vmul.f32 %v237, %v243
      %v277 = vld [vmem:[%s2] sm:$0x1]
      %v279 = vlaneseq
      %v280 = vshrl.u32 %v279, 7
      %v281 = vsub.s32 0, %v280
      %v282 = vrot.slane %v277, %v281
      %v284 = vadd.f32 %v245, %v282
      %v285 = vadd.f32 %v246, %v282
      %v286 = vadd.f32 %v247, %v282
      %v287 = vadd.f32 %v248, %v282
      %v288 = vadd.f32 %v249, %v282
      %v289 = vadd.f32 %v250, %v282
      %v290 = vadd.f32 %v251, %v282
      %v291 = vadd.f32 %v252, %v282
      %v292 = vadd.f32 %v253, %v282
      %v293 = vadd.f32 %v254, %v282
      %v294 = vadd.f32 %v255, %v282
      %v295 = vadd.f32 %v256, %v282
      %v296 = vadd.f32 %v257, %v282
      %v297 = vadd.f32 %v258, %v282
      %v298 = vadd.f32 %v259, %v282
      %v299 = vadd.f32 %v260, %v282
      %v300 = vadd.f32 %v261, %v282
      %v301 = vadd.f32 %v262, %v282
      %v302 = vadd.f32 %v263, %v282
      %v303 = vadd.f32 %v264, %v282
      %v304 = vadd.f32 %v265, %v282
      %v305 = vadd.f32 %v266, %v282
      %v306 = vadd.f32 %v267, %v282
      %v307 = vadd.f32 %v268, %v282
      %v308 = vadd.f32 %v269, %v282
      %v309 = vadd.f32 %v270, %v282
      %v310 = vadd.f32 %v271, %v282
      %v311 = vadd.f32 %v272, %v282
      %v312 = vadd.f32 %v273, %v282
      %v313 = vadd.f32 %v274, %v282
      %v314 = vadd.f32 %v275, %v282
      %v315 = vadd.f32 %v276, %v282
      %v316 = vmax.f32 %v284, 0.0
      %v317 = vmax.f32 %v285, 0.0
      %v318 = vmax.f32 %v286, 0.0
      %v319 = vmax.f32 %v287, 0.0
      %v320 = vmax.f32 %v288, 0.0
      %v321 = vmax.f32 %v289, 0.0
      %v322 = vmax.f32 %v290, 0.0
      %v323 = vmax.f32 %v291, 0.0
      %v324 = vmax.f32 %v292, 0.0
      %v325 = vmax.f32 %v293, 0.0
      %v326 = vmax.f32 %v294, 0.0
      %v327 = vmax.f32 %v295, 0.0
      %v328 = vmax.f32 %v296, 0.0
      %v329 = vmax.f32 %v297, 0.0
      %v330 = vmax.f32 %v298, 0.0
      %v331 = vmax.f32 %v299, 0.0
      %v332 = vmax.f32 %v300, 0.0
      %v333 = vmax.f32 %v301, 0.0
      %v334 = vmax.f32 %v302, 0.0
      %v335 = vmax.f32 %v303, 0.0
      %v336 = vmax.f32 %v304, 0.0
      %v337 = vmax.f32 %v305, 0.0
      %v338 = vmax.f32 %v306, 0.0
      %v339 = vmax.f32 %v307, 0.0
      %v340 = vmax.f32 %v308, 0.0
      %v341 = vmax.f32 %v309, 0.0
      %v342 = vmax.f32 %v310, 0.0
      %v343 = vmax.f32 %v311, 0.0
      %v344 = vmax.f32 %v312, 0.0
      %v345 = vmax.f32 %v313, 0.0
      %v346 = vmax.f32 %v314, 0.0
      %v347 = vmax.f32 %v315, 0.0
      %v348 = vpack.c.bf16 %v317, %v316
      %v349 = vpack.c.bf16 %v319, %v318
      %v350 = vpack.c.bf16 %v321, %v320
      %v351 = vpack.c.bf16 %v323, %v322
      %v352 = vpack.c.bf16 %v325, %v324
      %v353 = vpack.c.bf16 %v327, %v326
      %v354 = vpack.c.bf16 %v329, %v328
      %v355 = vpack.c.bf16 %v331, %v330
      %v356 = vpack.c.bf16 %v333, %v332
      %v357 = vpack.c.bf16 %v335, %v334
      %v358 = vpack.c.bf16 %v337, %v336
      %v359 = vpack.c.bf16 %v339, %v338
      %v360 = vpack.c.bf16 %v341, %v340
      %v361 = vpack.c.bf16 %v343, %v342
      %v362 = vpack.c.bf16 %v345, %v344
      %v363 = vpack.c.bf16 %v347, %v346
      %v380 = vunpack.c.l.b16 %v348
      %v381 = vunpack.c.h.b16 %v348
      %v382 = vunpack.c.l.b16 %v349
      %v383 = vunpack.c.h.b16 %v349
      %v384 = vunpack.c.l.b16 %v350
      %v385 = vunpack.c.h.b16 %v350
      %v386 = vunpack.c.l.b16 %v351
      %v387 = vunpack.c.h.b16 %v351
      %v388 = vunpack.c.l.b16 %v352
      %v389 = vunpack.c.h.b16 %v352
      %v390 = vunpack.c.l.b16 %v353
      %v391 = vunpack.c.h.b16 %v353
      %v392 = vunpack.c.l.b16 %v354
      %v393 = vunpack.c.h.b16 %v354
      %v394 = vunpack.c.l.b16 %v355
      %v395 = vunpack.c.h.b16 %v355
      %v396 = vunpack.c.l.b16 %v356
      %v397 = vunpack.c.h.b16 %v356
      %v398 = vunpack.c.l.b16 %v357
      %v399 = vunpack.c.h.b16 %v357
      %v400 = vunpack.c.l.b16 %v358
      %v401 = vunpack.c.h.b16 %v358
      %v402 = vunpack.c.l.b16 %v359
      %v403 = vunpack.c.h.b16 %v359
      %v404 = vunpack.c.l.b16 %v360
      %v405 = vunpack.c.h.b16 %v360
      %v406 = vunpack.c.l.b16 %v361
      %v407 = vunpack.c.h.b16 %v361
      %v408 = vunpack.c.l.b16 %v362
      %v409 = vunpack.c.h.b16 %v362
      %v410 = vunpack.c.l.b16 %v363
      %v411 = vunpack.c.h.b16 %v363
      %v412 = vpack.c.b16 %v380, %v380
      %v413 = vpack.c.b16 %v381, %v381
      %v414 = vpack.c.b16 %v382, %v382
      %v415 = vpack.c.b16 %v383, %v383
      %v416 = vpack.c.b16 %v384, %v384
      %v417 = vpack.c.b16 %v385, %v385
      %v418 = vpack.c.b16 %v386, %v386
      %v419 = vpack.c.b16 %v387, %v387
      %v420 = vpack.c.b16 %v388, %v388
      %v421 = vpack.c.b16 %v389, %v389
      %v422 = vpack.c.b16 %v390, %v390
      %v423 = vpack.c.b16 %v391, %v391
      %v424 = vpack.c.b16 %v392, %v392
      %v425 = vpack.c.b16 %v393, %v393
      %v426 = vpack.c.b16 %v394, %v394
      %v427 = vpack.c.b16 %v395, %v395
      %v428 = vpack.c.b16 %v396, %v396
      %v429 = vpack.c.b16 %v397, %v397
      %v430 = vpack.c.b16 %v398, %v398
      %v431 = vpack.c.b16 %v399, %v399
      %v432 = vpack.c.b16 %v400, %v400
      %v433 = vpack.c.b16 %v401, %v401
      %v434 = vpack.c.b16 %v402, %v402
      %v435 = vpack.c.b16 %v403, %v403
      %v436 = vpack.c.b16 %v404, %v404
      %v437 = vpack.c.b16 %v405, %v405
      %v438 = vpack.c.b16 %v406, %v406
      %v439 = vpack.c.b16 %v407, %v407
      %v440 = vpack.c.b16 %v408, %v408
      %v441 = vpack.c.b16 %v409, %v409
      %v442 = vpack.c.b16 %v410, %v410
      %v443 = vpack.c.b16 %v411, %v411
      %476 = vst [vmem:[%s172] sm:$0xf] %v412
      %477 = vst [vmem:[%s172 + $0x4] sm:$0xf] %v413
      %478 = vst [vmem:[%s172 + $0x8] sm:$0xf] %v414
      %479 = vst [vmem:[%s172 + $0xc] sm:$0xf] %v415
      %480 = vst [vmem:[%s172 + $0x10] sm:$0xf] %v416
      %481 = vst [vmem:[%s172 + $0x14] sm:$0xf] %v417
      %482 = vst [vmem:[%s172 + $0x18] sm:$0xf] %v418
      %483 = vst [vmem:[%s172 + $0x1c] sm:$0xf] %v419
      %484 = vst [vmem:[%s172 + $0x20] sm:$0xf] %v420
      %485 = vst [vmem:[%s172 + $0x24] sm:$0xf] %v421
      %486 = vst [vmem:[%s172 + $0x28] sm:$0xf] %v422
      %487 = vst [vmem:[%s172 + $0x2c] sm:$0xf] %v423
      %488 = vst [vmem:[%s172 + $0x30] sm:$0xf] %v424
      %489 = vst [vmem:[%s172 + $0x34] sm:$0xf] %v425
      %490 = vst [vmem:[%s172 + $0x38] sm:$0xf] %v426
      %491 = vst [vmem:[%s172 + $0x3c] sm:$0xf] %v427
      %492 = vst [vmem:[%s172 + $0x40] sm:$0xf] %v428
      %493 = vst [vmem:[%s172 + $0x44] sm:$0xf] %v429
      %494 = vst [vmem:[%s172 + $0x48] sm:$0xf] %v430
      %495 = vst [vmem:[%s172 + $0x4c] sm:$0xf] %v431
      %496 = vst [vmem:[%s172 + $0x50] sm:$0xf] %v432
      %497 = vst [vmem:[%s172 + $0x54] sm:$0xf] %v433
      %498 = vst [vmem:[%s172 + $0x58] sm:$0xf] %v434
      %499 = vst [vmem:[%s172 + $0x5c] sm:$0xf] %v435
      %500 = vst [vmem:[%s172 + $0x60] sm:$0xf] %v436
      %501 = vst [vmem:[%s172 + $0x64] sm:$0xf] %v437
      %502 = vst [vmem:[%s172 + $0x68] sm:$0xf] %v438
      %503 = vst [vmem:[%s172 + $0x6c] sm:$0xf] %v439
      %504 = vst [vmem:[%s172 + $0x70] sm:$0xf] %v440
      %505 = vst [vmem:[%s172 + $0x74] sm:$0xf] %v441
      %506 = vst [vmem:[%s172 + $0x78] sm:$0xf] %v442
      %507 = vst [vmem:[%s172 + $0x7c] sm:$0xf] %v443
      %s508 = smul.u32 32, %s14
      %p509 = scmp.lt.s32.totalorder %s508, 63
      %s510 = scalar_select %p509, %s508, 63
      %s511 = smul.addr %s510, 4
      %s512 = scalar_lea.vmem %s3, %s511
      // Predicated region
      $region33: #{resblock_forward.5} parent=31 // pred_check
        %p513 = pneg %p100
      $region34: #{resblock_forward.5} parent=31 // pred_check_branch
        %515 = sbr.rel (%p513) target = $region36
      $region35: #{resblock_forward.5} parent=31 // pred_region
        %s516 = smul.u32 32, %s14
      $region36: #{resblock_forward.5} parent=31 // pred_fallthru
        _
    $region32: #{resblock_forward.5} parent=5 // pred_fallthru
      _
    %p517 = scmp.le.s32.totalorder 2, %s9
    // Predicated region
    $region37: #{resblock_forward.5} parent=5 // pred_check
      %p518 = pneg %p517
    $region38: #{resblock_forward.5} parent=5 // pred_check_branch
      %520 = sbr.rel (%p518) target = $region40
    $region39: #{resblock_forward.5} parent=5 // pred_region
      %s521 = ssub.s32 %s9, 2
      // Predicated region
      $region41: #{resblock_forward.5} parent=39 // pred_check
        %p522 = pneg %p106
      $region42: #{resblock_forward.5} parent=39 // pred_check_branch
        %524 = sbr.rel (%p522) target = $region44
      $region43: #{resblock_forward.5} parent=39 // pred_region
        %s525 = smul.u32 32, %s15
        %p526 = scmp.lt.s32.totalorder %s525, 63
        %s527 = scalar_select %p526, %s525, 63
        %s528 = smul.addr %s527, 4
        %s529 = scalar_lea.vmem %s3, %s528
      $region44: #{resblock_forward.5} parent=39 // pred_fallthru
        _
    $region40: #{resblock_forward.5} parent=5 // pred_fallthru
      _
  $region6: #{resblock_forward.5} parent=0 // loop_footer
    %s13 = sadd.s32 1, %s9
  $region7: #{resblock_forward.5} parent=0 // loop_footer_branch
    %8 = sbr.rel target = $region3
  $region8: #{resblock_forward.5} parent=0 // loop_exit
    _

// kernel: resblock_forward.4
$region0: #{resblock_forward.4}
  #allocation0 [shape = 'u32[]', space=smem, size = 0x4, offset = 0x4, fixed_abs, tag = 'smem constant byte address 0x4 - core index']
  #allocation1 [shape = 'u32[144,128]{1,0:T(1,128)}', space=vmem, size = 0x12000, scoped, tag = 'internal scratch']
  %s0 = inlined_call_operand.vmem [shape: bf16[512,128], index: 0, kind: input, shape index: {}]
  %s1 = inlined_call_operand.vmem [shape: bf16[128,128], index: 1, kind: input, shape index: {}]
  %s2 = inlined_call_operand.vmem [shape: bf16[512,128], index: 2, kind: output, shape index: {0}]
  %s3 = inlined_call_operand.vmem [shape: f32[2,2,128], index: 3, kind: output, shape index: {1}]
  %4 = xla_tuple %s2, %s3
  %s5 = sld [smem:[#allocation0]]
  $region49: #{resblock_forward.4} parent=0
    _
  %s7 = ssub.s32 1, %s5
  %s8 = scalar_select 0, %s7, %s5
  loop: start=0, step=1, limit=4
  $region2: #{resblock_forward.4} parent=0 // loop_pre_header
    _
  $region3: #{resblock_forward.4} parent=0 // loop_header
    %s10 = sphi 0, %s14
    %p11 = scmp.ge.s32.totalorder %s10, 4
    %s20 = sphi 0, %s22
    %s23 = sphi 0, %s20
    %s24 = sphi 0, %s23
    %s40 = sphi 0, %s24
    %s44 = sphi 0, %s44
    %s46 = sphi 0, %s44
    %s47 = sphi 0, %s46
    %s61 = sphi 0, %s47
    %s67 = sphi 0, %s69
    %s70 = sphi 0, %s67
    %s71 = sphi 0, %s70
    %s87 = sphi 0, %s71
    %s93 = sphi 0, %s95
    %s96 = sphi 0, %s93
    %s97 = sphi 0, %s96
    %s113 = sphi 0, %s97
  $region4: #{resblock_forward.4} parent=0 // loop_header_branch
    %13 = sbr.rel (%p11) target = $region8
  $region5: #{resblock_forward.4} parent=0 // loop_body
    %s15 = ssub.s32 %s10, 1
    %s16 = ssub.s32 %s10, 2
    %s17 = sadd.s32 %s10, 1
    %s18 = ssub.s32 %s10, %s17
    %p19 = scmp.eq.s32.totalorder %s18, 0
    %s21 = sadd.s32 %s20, 1
    %s22 = scalar_select %p19, %s20, %s21
    %p25 = pneg %p19
    %p26 = scmp.eq.s32.totalorder %s10, 1
    %p27 = por %p25, %p26
    %p28 = scmp.ne.s32.totalorder %s20, %s23
    %p29 = scmp.eq.s32.totalorder %s10, 0
    %p30 = por %p28, %p29
    %p31 = scmp.ne.s32.totalorder %s20, %s23
    %p32 = scmp.eq.s32.totalorder %s15, 1
    %p33 = por %p31, %p32
    %p34 = scmp.ne.s32.totalorder %s23, %s24
    %p35 = scmp.eq.s32.totalorder %s15, 0
    %p36 = por %p34, %p35
    %p37 = scmp.ne.s32.totalorder %s23, %s24
    %p38 = scmp.eq.s32.totalorder %s16, 1
    %p39 = por %p37, %p38
    %p41 = scmp.ne.s32.totalorder %s24, %s40
    %p42 = scmp.eq.s32.totalorder %s16, 0
    %p43 = por %p41, %p42
    %s45 = sadd.s32 %s44, 1
    %p48 = scmp.eq.s32.totalorder %s10, 1
    %p49 = scmp.ne.s32.totalorder %s44, %s46
    %p50 = scmp.eq.s32.totalorder %s10, 0
    %p51 = por %p49, %p50
    %p52 = scmp.ne.s32.totalorder %s44, %s46
    %p53 = scmp.eq.s32.totalorder %s15, 1
    %p54 = por %p52, %p53
    %p55 = scmp.ne.s32.totalorder %s46, %s47
    %p56 = scmp.eq.s32.totalorder %s15, 0
    %p57 = por %p55, %p56
    %p58 = scmp.ne.s32.totalorder %s46, %s47
    %p59 = scmp.eq.s32.totalorder %s16, 1
    %p60 = por %p58, %p59
    %p62 = scmp.ne.s32.totalorder %s47, %s61
    %p63 = scmp.eq.s32.totalorder %s16, 0
    %p64 = por %p62, %p63
    %s65 = ssub.s32 %s10, %s17
    %p66 = scmp.eq.s32.totalorder %s65, 0
    %s68 = sadd.s32 %s67, 1
    %s69 = scalar_select %p66, %s67, %s68
    %p72 = pneg %p66
    %p73 = scmp.eq.s32.totalorder %s10, 1
    %p74 = por %p72, %p73
    %p75 = scmp.ne.s32.totalorder %s67, %s70
    %p76 = scmp.eq.s32.totalorder %s10, 0
    %p77 = por %p75, %p76
    %p78 = scmp.ne.s32.totalorder %s67, %s70
    %p79 = scmp.eq.s32.totalorder %s15, 1
    %p80 = por %p78, %p79
    %p81 = scmp.ne.s32.totalorder %s70, %s71
    %p82 = scmp.eq.s32.totalorder %s15, 0
    %p83 = por %p81, %p82
    %p84 = scmp.ne.s32.totalorder %s70, %s71
    %p85 = scmp.eq.s32.totalorder %s16, 1
    %p86 = por %p84, %p85
    %p88 = scmp.ne.s32.totalorder %s71, %s87
    %p89 = scmp.eq.s32.totalorder %s16, 0
    %p90 = por %p88, %p89
    %s91 = ssub.s32 %s10, %s17
    %p92 = scmp.eq.s32.totalorder %s91, 0
    %s94 = sadd.s32 %s93, 1
    %s95 = scalar_select %p92, %s93, %s94
    %p98 = pneg %p92
    %p99 = scmp.eq.s32.totalorder %s10, 1
    %p100 = por %p98, %p99
    %p101 = scmp.ne.s32.totalorder %s93, %s96
    %p102 = scmp.eq.s32.totalorder %s10, 0
    %p103 = por %p101, %p102
    %p104 = scmp.ne.s32.totalorder %s93, %s96
    %p105 = scmp.eq.s32.totalorder %s15, 1
    %p106 = por %p104, %p105
    %p107 = scmp.ne.s32.totalorder %s96, %s97
    %p108 = scmp.eq.s32.totalorder %s15, 0
    %p109 = por %p107, %p108
    %p110 = scmp.ne.s32.totalorder %s96, %s97
    %p111 = scmp.eq.s32.totalorder %s16, 1
    %p112 = por %p110, %p111
    %p114 = scmp.ne.s32.totalorder %s97, %s113
    %p115 = scmp.eq.s32.totalorder %s16, 0
    %p116 = por %p114, %p115
    %p117 = scmp.le.s32.totalorder 1, %s10
    %p118 = scmp.lt.s32.totalorder %s10, 3
    %p119 = pnand %p117, %p118
    %p120 = pneg %p119
    // Predicated region
    $region9: #{resblock_forward.4} parent=5 // pred_check
      _
    $region10: #{resblock_forward.4} parent=5 // pred_check_branch
      %122 = sbr.rel (%p119) target = $region12
    $region11: #{resblock_forward.4} parent=5 // pred_region
      %s123 = ssub.s32 %s10, 1
      // Predicated region
      $region13: #{resblock_forward.4} parent=11 // pred_check
        %p124 = pneg %p57
      $region14: #{resblock_forward.4} parent=11 // pred_check_branch
        %126 = sbr.rel (%p124) target = $region16
      $region15: #{resblock_forward.4} parent=11 // pred_region
        _
      $region16: #{resblock_forward.4} parent=11 // pred_fallthru
        _
    $region12: #{resblock_forward.4} parent=5 // pred_fallthru
      _
    %p127 = scmp.lt.s32.totalorder %s10, 2
    // Predicated region
    $region17: #{resblock_forward.4} parent=5 // pred_check
      %p128 = pneg %p127
    $region18: #{resblock_forward.4} parent=5 // pred_check_branch
      %130 = sbr.rel (%p128) target = $region20
    $region19: #{resblock_forward.4} parent=5 // pred_region
      // Predicated region
      $region21: #{resblock_forward.4} parent=19 // pred_check
        %p131 = pneg %p30
      $region22: #{resblock_forward.4} parent=19 // pred_check_branch
        %133 = sbr.rel (%p131) target = $region24
      $region23: #{resblock_forward.4} parent=19 // pred_region
        %s134 = smul.u32 32, %s10
        %p135 = scmp.lt.s32.totalorder %s134, 63
        %s136 = scalar_select %p135, %s134, 63
        %s137 = smul.addr %s136, 4
        %s138 = scalar_lea.vmem %s0, %s137
        %s139 = smul.u32 32, %s10
      $region24: #{resblock_forward.4} parent=19 // pred_fallthru
        _
    $region20: #{resblock_forward.4} parent=5 // pred_fallthru
      _
    %p140 = scmp.le.s32.totalorder 1, %s10
    %p141 = scmp.lt.s32.totalorder %s10, 3
    %p142 = pnand %p140, %p141
    %p143 = pneg %p142
    // Predicated region
    $region25: #{resblock_forward.4} parent=5 // pred_check
      _
    $region26: #{resblock_forward.4} parent=5 // pred_check_branch
      %145 = sbr.rel (%p142) target = $region28
    $region27: #{resblock_forward.4} parent=5 // pred_region
      %s146 = ssub.s32 %s10, 1
      %s147 = smul.u32 32, %s15
      %p148 = scmp.lt.s32.totalorder %s147, 63
      %s149 = scalar_select %p148, %s147, 63
      %s150 = smul.addr %s149, 4
      %s151 = scalar_lea.vmem %s0, %s150
      %p152 = pneg %p36
      %p153 = pneg %p33
      %p154 = pneg %p57
      %p155 = pneg %p54
      %p156 = pneg %p83
      %p157 = pneg %p80
      %s158 = smul.u32 32, %s15
      %p159 = scmp.lt.s32.totalorder %s158, 63
      %s160 = scalar_select %p159, %s158, 63
      %s161 = smul.addr %s160, 4
      %s162 = scalar_lea.vmem %s2, %s161
      %p163 = pneg %p109
      %p164 = pneg %p106
      %p165 = scmp.lt.s32.totalorder %s15, 1
      %s166 = scalar_select %p165, %s15, 1
      %s167 = smul.addr %s166, 2
      %s168 = scalar_lea.vmem %s3, %s167
      %s169 = smul.u32 32, %s15
      %p170 = scmp.lt.s32.totalorder %s169, 63
      %s171 = scalar_select %p170, %s169, 63
      %s172 = smul.addr %s171, 4
      %s173 = scalar_lea.vmem %s0, %s172
      %s174 = smul.u32 32, %s15
      %s175 = smul.u32 32, %s15
      %p176 = scmp.lt.s32.totalorder %s175, 63
      %s177 = scalar_select %p176, %s175, 63
      %s178 = smul.addr %s177, 4
      %s179 = scalar_lea.vmem %s2, %s178
      %s180 = smul.u32 32, %s15
      %p181 = scmp.lt.s32.totalorder %s15, 1
      %s182 = scalar_select %p181, %s15, 1
      %s183 = smul.addr %s182, 2
      %s184 = scalar_lea.vmem %s3, %s183
      %v186 = vld [vmem:[%s173] sm:$0xf]
      %v187 = vld [vmem:[%s173 + $0x4] sm:$0xf]
      %v188 = vld [vmem:[%s173 + $0x8] sm:$0xf]
      %v189 = vld [vmem:[%s173 + $0xc] sm:$0xf]
      %v190 = vld [vmem:[%s173 + $0x10] sm:$0xf]
      %v191 = vld [vmem:[%s173 + $0x14] sm:$0xf]
      %v192 = vld [vmem:[%s173 + $0x18] sm:$0xf]
      %v193 = vld [vmem:[%s173 + $0x1c] sm:$0xf]
      %v194 = vld [vmem:[%s173 + $0x20] sm:$0xf]
      %v195 = vld [vmem:[%s173 + $0x24] sm:$0xf]
      %v196 = vld [vmem:[%s173 + $0x28] sm:$0xf]
      %v197 = vld [vmem:[%s173 + $0x2c] sm:$0xf]
      %v198 = vld [vmem:[%s173 + $0x30] sm:$0xf]
      %v199 = vld [vmem:[%s173 + $0x34] sm:$0xf]
      %v200 = vld [vmem:[%s173 + $0x38] sm:$0xf]
      %v201 = vld [vmem:[%s173 + $0x3c] sm:$0xf]
      %v202 = vld [vmem:[%s173 + $0x40] sm:$0xf]
      %v203 = vld [vmem:[%s173 + $0x44] sm:$0xf]
      %v204 = vld [vmem:[%s173 + $0x48] sm:$0xf]
      %v205 = vld [vmem:[%s173 + $0x4c] sm:$0xf]
      %v206 = vld [vmem:[%s173 + $0x50] sm:$0xf]
      %v207 = vld [vmem:[%s173 + $0x54] sm:$0xf]
      %v208 = vld [vmem:[%s173 + $0x58] sm:$0xf]
      %v209 = vld [vmem:[%s173 + $0x5c] sm:$0xf]
      %v210 = vld [vmem:[%s173 + $0x60] sm:$0xf]
      %v211 = vld [vmem:[%s173 + $0x64] sm:$0xf]
      %v212 = vld [vmem:[%s173 + $0x68] sm:$0xf]
      %v213 = vld [vmem:[%s173 + $0x6c] sm:$0xf]
      %v214 = vld [vmem:[%s173 + $0x70] sm:$0xf]
      %v215 = vld [vmem:[%s173 + $0x74] sm:$0xf]
      %v216 = vld [vmem:[%s173 + $0x78] sm:$0xf]
      %v217 = vld [vmem:[%s173 + $0x7c] sm:$0xf]
      %v218 = vld [vmem:[%s1] sm:$0xf]
      %v219 = vld [vmem:[%s1 + $0x4] sm:$0xf]
      %v220 = vld [vmem:[%s1 + $0x8] sm:$0xf]
      %v221 = vld [vmem:[%s1 + $0xc] sm:$0xf]
      %v222 = vld [vmem:[%s1 + $0x10] sm:$0xf]
      %v223 = vld [vmem:[%s1 + $0x14] sm:$0xf]
      %v224 = vld [vmem:[%s1 + $0x18] sm:$0xf]
      %v225 = vld [vmem:[%s1 + $0x1c] sm:$0xf]
      %v226 = vld [vmem:[%s1 + $0x20] sm:$0xf]
      %v227 = vld [vmem:[%s1 + $0x24] sm:$0xf]
      %v228 = vld [vmem:[%s1 + $0x28] sm:$0xf]
      %v229 = vld [vmem:[%s1 + $0x2c] sm:$0xf]
      %v230 = vld [vmem:[%s1 + $0x30] sm:$0xf]
      %v231 = vld [vmem:[%s1 + $0x34] sm:$0xf]
      %v232 = vld [vmem:[%s1 + $0x38] sm:$0xf]
      %v233 = vld [vmem:[%s1 + $0x3c] sm:$0xf]
      %v266 = vunpack.c.l.b16 %v186
      %v267 = vunpack.c.l.b16 %v187
      %v268 = vunpack.c.l.b16 %v188
      %v269 = vunpack.c.l.b16 %v189
      %v270 = vunpack.c.l.b16 %v190
      %v271 = vunpack.c.l.b16 %v191
      %v272 = vunpack.c.l.b16 %v192
      %v273 = vunpack.c.l.b16 %v193
      %v274 = vunpack.c.l.b16 %v194
      %v275 = vunpack.c.l.b16 %v195
      %v276 = vunpack.c.l.b16 %v196
      %v277 = vunpack.c.l.b16 %v197
      %v278 = vunpack.c.l.b16 %v198
      %v279 = vunpack.c.l.b16 %v199
      %v280 = vunpack.c.l.b16 %v200
      %v281 = vunpack.c.l.b16 %v201
      %v282 = vunpack.c.l.b16 %v202
      %v283 = vunpack.c.l.b16 %v203
      %v284 = vunpack.c.l.b16 %v204
      %v285 = vunpack.c.l.b16 %v205
      %v286 = vunpack.c.l.b16 %v206
      %v287 = vunpack.c.l.b16 %v207
      %v288 = vunpack.c.l.b16 %v208
      %v289 = vunpack.c.l.b16 %v209
      %v290 = vunpack.c.l.b16 %v210
      %v291 = vunpack.c.l.b16 %v211
      %v292 = vunpack.c.l.b16 %v212
      %v293 = vunpack.c.l.b16 %v213
      %v294 = vunpack.c.l.b16 %v214
      %v295 = vunpack.c.l.b16 %v215
      %v296 = vunpack.c.l.b16 %v216
      %v297 = vunpack.c.l.b16 %v217
      %v298 = vpack.c.b16 %v267, %v266
      %v299 = vpack.c.b16 %v269, %v268
      %v300 = vpack.c.b16 %v271, %v270
      %v301 = vpack.c.b16 %v273, %v272
      %v302 = vpack.c.b16 %v275, %v274
      %v303 = vpack.c.b16 %v277, %v276
      %v304 = vpack.c.b16 %v279, %v278
      %v305 = vpack.c.b16 %v281, %v280
      %v306 = vpack.c.b16 %v283, %v282
      %v307 = vpack.c.b16 %v285, %v284
      %v308 = vpack.c.b16 %v287, %v286
      %v309 = vpack.c.b16 %v289, %v288
      %v310 = vpack.c.b16 %v291, %v290
      %v311 = vpack.c.b16 %v293, %v292
      %v312 = vpack.c.b16 %v295, %v294
      %v313 = vpack.c.b16 %v297, %v296
      %v346 = vunpack.c.l.b16 %v218
      %v347 = vunpack.c.l.b16 %v219
      %v348 = vunpack.c.l.b16 %v220
      %v349 = vunpack.c.l.b16 %v221
      %v350 = vunpack.c.l.b16 %v222
      %v351 = vunpack.c.l.b16 %v223
      %v352 = vunpack.c.l.b16 %v224
      %v353 = vunpack.c.l.b16 %v225
      %v354 = vunpack.c.l.b16 %v226
      %v355 = vunpack.c.l.b16 %v227
      %v356 = vunpack.c.l.b16 %v228
      %v357 = vunpack.c.l.b16 %v229
      %v358 = vunpack.c.l.b16 %v230
      %v359 = vunpack.c.l.b16 %v231
      %v360 = vunpack.c.l.b16 %v232
      %v361 = vunpack.c.l.b16 %v233
      %v362 = vpack.c.b16 %v347, %v346
      %v363 = vpack.c.b16 %v349, %v348
      %v364 = vpack.c.b16 %v351, %v350
      %v365 = vpack.c.b16 %v353, %v352
      %v366 = vpack.c.b16 %v355, %v354
      %v367 = vpack.c.b16 %v357, %v356
      %v368 = vpack.c.b16 %v359, %v358
      %v369 = vpack.c.b16 %v361, %v360
      %378 = vmatprep.subr.bf16.mxu0 0
      %379 = vmatpush1.bf16.msra.mxu0 %v362
      %380 = vmatprep.subr.bf16.mxu0 0
      %381 = vmatpush1.bf16.msra.mxu0 %v363
      %382 = vmatprep.subr.bf16.mxu0 0
      %383 = vmatpush1.bf16.msra.mxu0 %v364
      %384 = vmatprep.subr.bf16.mxu0 0
      %385 = vmatpush1.bf16.msra.mxu0 %v365
      %386 = vmatprep.subr.bf16.mxu0 0
      %387 = vmatpush1.bf16.msra.mxu0 %v366
      %388 = vmatprep.subr.bf16.mxu0 0
      %389 = vmatpush1.bf16.msra.mxu0 %v367
      %390 = vmatprep.subr.bf16.mxu0 0
      %391 = vmatpush1.bf16.msra.mxu0 %v368
      %392 = vmatprep.subr.bf16.mxu0 0
      %393 = vmatpush1.bf16.msra.mxu0 %v369
      %394 = vmatprep.subr.bf16.mxu0 0
      %395 = vmatpush1.bf16.msra.mxu0 0
      %396 = vmatprep.subr.bf16.mxu0 0
      %397 = vmatpush1.bf16.msra.mxu0 0
      %398 = vmatprep.subr.bf16.mxu0 0
      %399 = vmatpush1.bf16.msra.mxu0 0
      %400 = vmatprep.subr.bf16.mxu0 0
      %401 = vmatpush1.bf16.msra.mxu0 0
      %402 = vmatprep.subr.bf16.mxu0 0
      %403 = vmatpush1.bf16.msra.mxu0 0
      %404 = vmatprep.subr.bf16.mxu0 0
      %405 = vmatpush1.bf16.msra.mxu0 0
      %406 = vmatprep.subr.bf16.mxu0 0
      %407 = vmatpush1.bf16.msra.mxu0 0
      %408 = vmatprep.subr.bf16.mxu0 0
      %409 = vmatpush1.bf16.msra.mxu0 0
      %410 = vmatprep.mubr.bf16.mxu0 0
      %411 = vmatmul.mubr.bf16.gmra.mrb[0].mxu0 %v298
      %v412 = vpop.f32.mrb[0].mxu0
      %v413 = vadd.f32 0.0, %v412
      %v414 = vpop.f32.mrb[0].mxu0
      %v415 = vpop.f32.mrb[0].mxu0
      %v416 = vadd.f32 0.0, %v415
      %v417 = vpop.f32.mrb[0].mxu0
      %418 = vmatprep.mubr.bf16.mxu0 0
      %419 = vmatmul.mubr.bf16.gmra.mrb[0].mxu0 %v299
      %v420 = vpop.f32.mrb[0].mxu0
      %v421 = vadd.f32 0.0, %v420
      %v422 = vpop.f32.mrb[0].mxu0
      %v423 = vpop.f32.mrb[0].mxu0
      %v424 = vadd.f32 0.0, %v423
      %v425 = vpop.f32.mrb[0].mxu0
      %426 = vmatprep.mubr.bf16.mxu0 0
      %427 = vmatmul.mubr.bf16.gmra.mrb[0].mxu0 %v300
      %v428 = vpop.f32.mrb[0].mxu0
      %v429 = vadd.f32 0.0, %v428
      %v430 = vpop.f32.mrb[0].mxu0
      %v431 = vpop.f32.mrb[0].mxu0
      %v432 = vadd.f32 0.0, %v431
      %v433 = vpop.f32.mrb[0].mxu0
      %434 = vmatprep.mubr.bf16.mxu0 0
      %435 = vmatmul.mubr.bf16.gmra.mrb[0].mxu0 %v301
      %v436 = vpop.f32.mrb[0].mxu0
      %v437 = vadd.f32 0.0, %v436
      %v438 = vpop.f32.mrb[0].mxu0
      %v439 = vpop.f32.mrb[0].mxu0
      %v440 = vadd.f32 0.0, %v439
      %v441 = vpop.f32.mrb[0].mxu0
      %442 = vmatprep.mubr.bf16.mxu0 0
      %443 = vmatmul.mubr.bf16.gmra.mrb[0].mxu0 %v302
      %v444 = vpop.f32.mrb[0].mxu0
      %v445 = vadd.f32 0.0, %v444
      %v446 = vpop.f32.mrb[0].mxu0
      %v447 = vpop.f32.mrb[0].mxu0
      %v448 = vadd.f32 0.0, %v447
      %v449 = vpop.f32.mrb[0].mxu0
      %450 = vmatprep.mubr.bf16.mxu0 0
      %451 = vmatmul.mubr.bf16.gmra.mrb[0].mxu0 %v303
      %v452 = vpop.f32.mrb[0].mxu0
      %v453 = vadd.f32 0.0, %v452
      %v454 = vpop.f32.mrb[0].mxu0
      %v455 = vpop.f32.mrb[0].mxu0
      %v456 = vadd.f32 0.0, %v455
      %v457 = vpop.f32.mrb[0].mxu0
      %458 = vmatprep.mubr.bf16.mxu0 0
      %459 = vmatmul.mubr.bf16.gmra.mrb[0].mxu0 %v304
      %v460 = vpop.f32.mrb[0].mxu0
      %v461 = vadd.f32 0.0, %v460
      %v462 = vpop.f32.mrb[0].mxu0
      %v463 = vpop.f32.mrb[0].mxu0
      %v464 = vadd.f32 0.0, %v463
      %v465 = vpop.f32.mrb[0].mxu0
      %466 = vmatprep.mubr.bf16.mxu0 0
      %467 = vmatmul.mubr.bf16.gmra.mrb[0].mxu0 %v305
      %v468 = vpop.f32.mrb[0].mxu0
      %v469 = vadd.f32 0.0, %v468
      %v470 = vpop.f32.mrb[0].mxu0
      %v471 = vpop.f32.mrb[0].mxu0
      %v472 = vadd.f32 0.0, %v471
      %v473 = vpop.f32.mrb[0].mxu0
      %474 = vmatprep.mubr.bf16.mxu0 0
      %475 = vmatmul.mubr.bf16.gmra.mrb[0].mxu0 %v306
      %v476 = vpop.f32.mrb[0].mxu0
      %v477 = vadd.f32 0.0, %v476
      %v478 = vpop.f32.mrb[0].mxu0
      %v479 = vpop.f32.mrb[0].mxu0
      %v480 = vadd.f32 0.0, %v479
      %v481 = vpop.f32.mrb[0].mxu0
      %482 = vmatprep.mubr.bf16.mxu0 0
      %483 = vmatmul.mubr.bf16.gmra.mrb[0].mxu0 %v307
      %v484 = vpop.f32.mrb[0].mxu0
      %v485 = vadd.f32 0.0, %v484
      %v486 = vpop.f32.mrb[0].mxu0
      %v487 = vpop.f32.mrb[0].mxu0
      %v488 = vadd.f32 0.0, %v487
      %v489 = vpop.f32.mrb[0].mxu0
      %490 = vmatprep.mubr.bf16.mxu0 0
      %491 = vmatmul.mubr.bf16.gmra.mrb[0].mxu0 %v308
      %v492 = vpop.f32.mrb[0].mxu0
      %v493 = vadd.f32 0.0, %v492
      %v494 = vpop.f32.mrb[0].mxu0
      %v495 = vpop.f32.mrb[0].mxu0
      %v496 = vadd.f32 0.0, %v495
      %v497 = vpop.f32.mrb[0].mxu0
      %498 = vmatprep.mubr.bf16.mxu0 0
      %499 = vmatmul.mubr.bf16.gmra.mrb[0].mxu0 %v309
      %v500 = vpop.f32.mrb[0].mxu0
      %v501 = vadd.f32 0.0, %v500
      %v502 = vpop.f32.mrb[0].mxu0
      %v503 = vpop.f32.mrb[0].mxu0
      %v504 = vadd.f32 0.0, %v503
      %v505 = vpop.f32.mrb[0].mxu0
      %506 = vmatprep.mubr.bf16.mxu0 0
      %507 = vmatmul.mubr.bf16.gmra.mrb[0].mxu0 %v310
      %v508 = vpop.f32.mrb[0].mxu0
      %v509 = vadd.f32 0.0, %v508
      %v510 = vpop.f32.mrb[0].mxu0
      %v511 = vpop.f32.mrb[0].mxu0
      %v512 = vadd.f32 0.0, %v511
      %v513 = vpop.f32.mrb[0].mxu0
      %514 = vmatprep.mubr.bf16.mxu0 0
      %515 = vmatmul.mubr.bf16.gmra.mrb[0].mxu0 %v311
      %v516 = vpop.f32.mrb[0].mxu0
      %v517 = vadd.f32 0.0, %v516
      %v518 = vpop.f32.mrb[0].mxu0
      %v519 = vpop.f32.mrb[0].mxu0
      %v520 = vadd.f32 0.0, %v519
      %v521 = vpop.f32.mrb[0].mxu0
      %522 = vmatprep.mubr.bf16.mxu0 0
      %523 = vmatmul.mubr.bf16.gmra.mrb[0].mxu0 %v312
      %v524 = vpop.f32.mrb[0].mxu0
      %v525 = vadd.f32 0.0, %v524
      %v526 = vpop.f32.mrb[0].mxu0
      %v527 = vpop.f32.mrb[0].mxu0
      %v528 = vadd.f32 0.0, %v527
      %v529 = vpop.f32.mrb[0].mxu0
      %530 = vmatprep.mubr.bf16.mxu0 0
      %531 = vmatmul.mubr.bf16.gmra.mrb[0].mxu0 %v313
      %v532 = vpop.f32.mrb[0].mxu0
      %v533 = vadd.f32 0.0, %v532
      %v534 = vpop.f32.mrb[0].mxu0
      %v535 = vpop.f32.mrb[0].mxu0
      %v536 = vadd.f32 0.0, %v535
      %v537 = vpop.f32.mrb[0].mxu0
      %538 = vdwg.mxu0
      %v539 = vpack.c.bf16 %v416, %v413
      %v540 = vpack.c.bf16 %v424, %v421
      %v541 = vpack.c.bf16 %v432, %v429
      %v542 = vpack.c.bf16 %v440, %v437
      %v543 = vpack.c.bf16 %v448, %v445
      %v544 = vpack.c.bf16 %v456, %v453
      %v545 = vpack.c.bf16 %v464, %v461
      %v546 = vpack.c.bf16 %v472, %v469
      %v547 = vpack.c.bf16 %v480, %v477
      %v548 = vpack.c.bf16 %v488, %v485
      %v549 = vpack.c.bf16 %v496, %v493
      %v550 = vpack.c.bf16 %v504, %v501
      %v551 = vpack.c.bf16 %v512, %v509
      %v552 = vpack.c.bf16 %v520, %v517
      %v553 = vpack.c.bf16 %v528, %v525
      %v554 = vpack.c.bf16 %v536, %v533
      %v571 = vunpack.c.l.b16 %v539
      %v572 = vunpack.c.h.b16 %v539
      %v573 = vunpack.c.l.b16 %v540
      %v574 = vunpack.c.h.b16 %v540
      %v575 = vunpack.c.l.b16 %v541
      %v576 = vunpack.c.h.b16 %v541
      %v577 = vunpack.c.l.b16 %v542
      %v578 = vunpack.c.h.b16 %v542
      %v579 = vunpack.c.l.b16 %v543
      %v580 = vunpack.c.h.b16 %v543
      %v581 = vunpack.c.l.b16 %v544
      %v582 = vunpack.c.h.b16 %v544
      %v583 = vunpack.c.l.b16 %v545
      %v584 = vunpack.c.h.b16 %v545
      %v585 = vunpack.c.l.b16 %v546
      %v586 = vunpack.c.h.b16 %v546
      %v587 = vunpack.c.l.b16 %v547
      %v588 = vunpack.c.h.b16 %v547
      %v589 = vunpack.c.l.b16 %v548
      %v590 = vunpack.c.h.b16 %v548
      %v591 = vunpack.c.l.b16 %v549
      %v592 = vunpack.c.h.b16 %v549
      %v593 = vunpack.c.l.b16 %v550
      %v594 = vunpack.c.h.b16 %v550
      %v595 = vunpack.c.l.b16 %v551
      %v596 = vunpack.c.h.b16 %v551
      %v597 = vunpack.c.l.b16 %v552
      %v598 = vunpack.c.h.b16 %v552
      %v599 = vunpack.c.l.b16 %v553
      %v600 = vunpack.c.h.b16 %v553
      %v601 = vunpack.c.l.b16 %v554
      %v602 = vunpack.c.h.b16 %v554
      %v603 = vpack.c.b16 %v571, %v571
      %v604 = vpack.c.b16 %v572, %v572
      %v605 = vpack.c.b16 %v573, %v573
      %v606 = vpack.c.b16 %v574, %v574
      %v607 = vpack.c.b16 %v575, %v575
      %v608 = vpack.c.b16 %v576, %v576
      %v609 = vpack.c.b16 %v577, %v577
      %v610 = vpack.c.b16 %v578, %v578
      %v611 = vpack.c.b16 %v579, %v579
      %v612 = vpack.c.b16 %v580, %v580
      %v613 = vpack.c.b16 %v581, %v581
      %v614 = vpack.c.b16 %v582, %v582
      %v615 = vpack.c.b16 %v583, %v583
      %v616 = vpack.c.b16 %v584, %v584
      %v617 = vpack.c.b16 %v585, %v585
      %v618 = vpack.c.b16 %v586, %v586
      %v619 = vpack.c.b16 %v587, %v587
      %v620 = vpack.c.b16 %v588, %v588
      %v621 = vpack.c.b16 %v589, %v589
      %v622 = vpack.c.b16 %v590, %v590
      %v623 = vpack.c.b16 %v591, %v591
      %v624 = vpack.c.b16 %v592, %v592
      %v625 = vpack.c.b16 %v593, %v593
      %v626 = vpack.c.b16 %v594, %v594
      %v627 = vpack.c.b16 %v595, %v595
      %v628 = vpack.c.b16 %v596, %v596
      %v629 = vpack.c.b16 %v597, %v597
      %v630 = vpack.c.b16 %v598, %v598
      %v631 = vpack.c.b16 %v599, %v599
      %v632 = vpack.c.b16 %v600, %v600
      %v633 = vpack.c.b16 %v601, %v601
      %v634 = vpack.c.b16 %v602, %v602
      %667 = vst [vmem:[%s179] sm:$0xf] %v603
      %668 = vst [vmem:[%s179 + $0x4] sm:$0xf] %v604
      %669 = vst [vmem:[%s179 + $0x8] sm:$0xf] %v605
      %670 = vst [vmem:[%s179 + $0xc] sm:$0xf] %v606
      %671 = vst [vmem:[%s179 + $0x10] sm:$0xf] %v607
      %672 = vst [vmem:[%s179 + $0x14] sm:$0xf] %v608
      %673 = vst [vmem:[%s179 + $0x18] sm:$0xf] %v609
      %674 = vst [vmem:[%s179 + $0x1c] sm:$0xf] %v610
      %675 = vst [vmem:[%s179 + $0x20] sm:$0xf] %v611
      %676 = vst [vmem:[%s179 + $0x24] sm:$0xf] %v612
      %677 = vst [vmem:[%s179 + $0x28] sm:$0xf] %v613
      %678 = vst [vmem:[%s179 + $0x2c] sm:$0xf] %v614
      %679 = vst [vmem:[%s179 + $0x30] sm:$0xf] %v615
      %680 = vst [vmem:[%s179 + $0x34] sm:$0xf] %v616
      %681 = vst [vmem:[%s179 + $0x38] sm:$0xf] %v617
      %682 = vst [vmem:[%s179 + $0x3c] sm:$0xf] %v618
      %683 = vst [vmem:[%s179 + $0x40] sm:$0xf] %v619
      %684 = vst [vmem:[%s179 + $0x44] sm:$0xf] %v620
      %685 = vst [vmem:[%s179 + $0x48] sm:$0xf] %v621
      %686 = vst [vmem:[%s179 + $0x4c] sm:$0xf] %v622
      %687 = vst [vmem:[%s179 + $0x50] sm:$0xf] %v623
      %688 = vst [vmem:[%s179 + $0x54] sm:$0xf] %v624
      %689 = vst [vmem:[%s179 + $0x58] sm:$0xf] %v625
      %690 = vst [vmem:[%s179 + $0x5c] sm:$0xf] %v626
      %691 = vst [vmem:[%s179 + $0x60] sm:$0xf] %v627
      %692 = vst [vmem:[%s179 + $0x64] sm:$0xf] %v628
      %693 = vst [vmem:[%s179 + $0x68] sm:$0xf] %v629
      %694 = vst [vmem:[%s179 + $0x6c] sm:$0xf] %v630
      %695 = vst [vmem:[%s179 + $0x70] sm:$0xf] %v631
      %696 = vst [vmem:[%s179 + $0x74] sm:$0xf] %v632
      %697 = vst [vmem:[%s179 + $0x78] sm:$0xf] %v633
      %698 = vst [vmem:[%s179 + $0x7c] sm:$0xf] %v634
      %s699 = smul.u32 %s15, 256
      %s700 = ssub.s32 512, %s699
      %p701 = scmp.lt.s32.totalorder %s700, 256
      %s702 = scalar_select %p701, %s700, 256
      %s703 = scvt.s32.f32 %s702
      %s704 = ssub.f32 256.0, %s703
      %v705 = vadd.f32 %v413, %v416
      %v706 = vadd.f32 %v705, %v421
      %v707 = vadd.f32 %v706, %v424
      %v708 = vadd.f32 %v707, %v429
      %v709 = vadd.f32 %v708, %v432
      %v710 = vadd.f32 %v709, %v437
      %v711 = vadd.f32 %v710, %v440
      %v712 = vadd.f32 %v711, %v445
      %v713 = vadd.f32 %v712, %v448
      %v714 = vadd.f32 %v713, %v453
      %v715 = vadd.f32 %v714, %v456
      %v716 = vadd.f32 %v715, %v461
      %v717 = vadd.f32 %v716, %v464
      %v718 = vadd.f32 %v717, %v469
      %v719 = vadd.f32 %v718, %v472
      %v720 = vadd.f32 %v719, %v477
      %v721 = vadd.f32 %v720, %v480
      %v722 = vadd.f32 %v721, %v485
      %v723 = vadd.f32 %v722, %v488
      %v724 = vadd.f32 %v723, %v493
      %v725 = vadd.f32 %v724, %v496
      %v726 = vadd.f32 %v725, %v501
      %v727 = vadd.f32 %v726, %v504
      %v728 = vadd.f32 %v727, %v509
      %v729 = vadd.f32 %v728, %v512
      %v730 = vadd.f32 %v729, %v517
      %v731 = vadd.f32 %v730, %v520
      %v732 = vadd.f32 %v731, %v525
      %v733 = vadd.f32 %v732, %v528
      %v734 = vadd.f32 %v733, %v533
      %v735 = vadd.f32 %v734, %v536
      %v736 = vrot.slane %v735, 4
      %v737 = vadd.f32 %v735, %v736
      %v738 = vrot.slane %v737, 2
      %v739 = vadd.f32 %v737, %v738
      %v740 = vrot.slane %v739, 1
      %v741 = vadd.f32 %v739, %v740
      %v742 = vstv %s703
      %v743 = vrcp.pop %v742
      %v744 = vmul.f32 %v741, %v743
      %v745 = vsub.f32 %v413, %v744
      %v746 = vsub.f32 %v416, %v744
      %v747 = vsub.f32 %v421, %v744
      %v748 = vsub.f32 %v424, %v744
      %v749 = vsub.f32 %v429, %v744
      %v750 = vsub.f32 %v432, %v744
      %v751 = vsub.f32 %v437, %v744
      %v752 = vsub.f32 %v440, %v744
      %v753 = vsub.f32 %v445, %v744
      %v754 = vsub.f32 %v448, %v744
      %v755 = vsub.f32 %v453, %v744
      %v756 = vsub.f32 %v456, %v744
      %v757 = vsub.f32 %v461, %v744
      %v758 = vsub.f32 %v464, %v744
      %v759 = vsub.f32 %v469, %v744
      %v760 = vsub.f32 %v472, %v744
      %v761 = vsub.f32 %v477, %v744
      %v762 = vsub.f32 %v480, %v744
      %v763 = vsub.f32 %v485, %v744
      %v764 = vsub.f32 %v488, %v744
      %v765 = vsub.f32 %v493, %v744
      %v766 = vsub.f32 %v496, %v744
      %v767 = vsub.f32 %v501, %v744
      %v768 = vsub.f32 %v504, %v744
      %v769 = vsub.f32 %v509, %v744
      %v770 = vsub.f32 %v512, %v744
      %v771 = vsub.f32 %v517, %v744
      %v772 = vsub.f32 %v520, %v744
      %v773 = vsub.f32 %v525, %v744
      %v774 = vsub.f32 %v528, %v744
      %v775 = vsub.f32 %v533, %v744
      %v776 = vsub.f32 %v536, %v744
      %v777 = vmul.f32 %v745, %v745
      %v778 = vmul.f32 %v746, %v746
      %v779 = vmul.f32 %v747, %v747
      %v780 = vmul.f32 %v748, %v748
      %v781 = vmul.f32 %v749, %v749
      %v782 = vmul.f32 %v750, %v750
      %v783 = vmul.f32 %v751, %v751
      %v784 = vmul.f32 %v752, %v752
      %v785 = vmul.f32 %v753, %v753
      %v786 = vmul.f32 %v754, %v754
      %v787 = vmul.f32 %v755, %v755
      %v788 = vmul.f32 %v756, %v756
      %v789 = vmul.f32 %v757, %v757
      %v790 = vmul.f32 %v758, %v758
      %v791 = vmul.f32 %v759, %v759
      %v792 = vmul.f32 %v760, %v760
      %v793 = vmul.f32 %v761, %v761
      %v794 = vmul.f32 %v762, %v762
      %v795 = vmul.f32 %v763, %v763
      %v796 = vmul.f32 %v764, %v764
      %v797 = vmul.f32 %v765, %v765
      %v798 = vmul.f32 %v766, %v766
      %v799 = vmul.f32 %v767, %v767
      %v800 = vmul.f32 %v768, %v768
      %v801 = vmul.f32 %v769, %v769
      %v802 = vmul.f32 %v770, %v770
      %v803 = vmul.f32 %v771, %v771
      %v804 = vmul.f32 %v772, %v772
      %v805 = vmul.f32 %v773, %v773
      %v806 = vmul.f32 %v774, %v774
      %v807 = vmul.f32 %v775, %v775
      %v808 = vmul.f32 %v776, %v776
      %v809 = vadd.f32 %v777, %v778
      %v810 = vadd.f32 %v809, %v779
      %v811 = vadd.f32 %v810, %v780
      %v812 = vadd.f32 %v811, %v781
      %v813 = vadd.f32 %v812, %v782
      %v814 = vadd.f32 %v813, %v783
      %v815 = vadd.f32 %v814, %v784
      %v816 = vadd.f32 %v815, %v785
      %v817 = vadd.f32 %v816, %v786
      %v818 = vadd.f32 %v817, %v787
      %v819 = vadd.f32 %v818, %v788
      %v820 = vadd.f32 %v819, %v789
      %v821 = vadd.f32 %v820, %v790
      %v822 = vadd.f32 %v821, %v791
      %v823 = vadd.f32 %v822, %v792
      %v824 = vadd.f32 %v823, %v793
      %v825 = vadd.f32 %v824, %v794
      %v826 = vadd.f32 %v825, %v795
      %v827 = vadd.f32 %v826, %v796
      %v828 = vadd.f32 %v827, %v797
      %v829 = vadd.f32 %v828, %v798
      %v830 = vadd.f32 %v829, %v799
      %v831 = vadd.f32 %v830, %v800
      %v832 = vadd.f32 %v831, %v801
      %v833 = vadd.f32 %v832, %v802
      %v834 = vadd.f32 %v833, %v803
      %v835 = vadd.f32 %v834, %v804
      %v836 = vadd.f32 %v835, %v805
      %v837 = vadd.f32 %v836, %v806
      %v838 = vadd.f32 %v837, %v807
      %v839 = vadd.f32 %v838, %v808
      %v840 = vrot.slane %v839, 4
      %v841 = vadd.f32 %v839, %v840
      %v842 = vrot.slane %v841, 2
      %v843 = vadd.f32 %v841, %v842
      %v844 = vrot.slane %v843, 1
      %v845 = vadd.f32 %v843, %v844
      %v846 = vstv %s704
      %v847 = vmul.f32 %v846, %v744
      %v848 = vmul.f32 %v847, %v744
      %v849 = vsub.f32 %v845, %v848
      %vm850 = vcmask 1040384
      %v851 = vsel %vm850, %v741, %v849
      %852 = vst [vmem:[%s184] sm:$0x3] %v851
      %s853 = smul.u32 32, %s15
      %p854 = scmp.lt.s32.totalorder %s853, 63
      %s855 = scalar_select %p854, %s853, 63
      %s856 = smul.addr %s855, 4
      %s857 = scalar_lea.vmem %s2, %s856
      %p858 = scmp.lt.s32.totalorder %s15, 1
      %s859 = scalar_select %p858, %s15, 1
      %s860 = smul.addr %s859, 2
      %s861 = scalar_lea.vmem %s3, %s860
      // Predicated region
      $region29: #{resblock_forward.4} parent=27 // pred_check
        %p862 = pneg %p80
      $region30: #{resblock_forward.4} parent=27 // pred_check_branch
        %864 = sbr.rel (%p862) target = $region32
      $region31: #{resblock_forward.4} parent=27 // pred_region
        %s865 = smul.u32 32, %s15
      $region32: #{resblock_forward.4} parent=27 // pred_fallthru
        _
      // Predicated region
      $region33: #{resblock_forward.4} parent=27 // pred_check
        %p866 = pneg %p106
      $region34: #{resblock_forward.4} parent=27 // pred_check_branch
        %868 = sbr.rel (%p866) target = $region36
      $region35: #{resblock_forward.4} parent=27 // pred_region
        _
      $region36: #{resblock_forward.4} parent=27 // pred_fallthru
        _
    $region28: #{resblock_forward.4} parent=5 // pred_fallthru
      _
    %p869 = scmp.le.s32.totalorder 2, %s10
    // Predicated region
    $region37: #{resblock_forward.4} parent=5 // pred_check
      %p870 = pneg %p869
    $region38: #{resblock_forward.4} parent=5 // pred_check_branch
      %872 = sbr.rel (%p870) target = $region40
    $region39: #{resblock_forward.4} parent=5 // pred_region
      %s873 = ssub.s32 %s10, 2
      // Predicated region
      $region41: #{resblock_forward.4} parent=39 // pred_check
        %p874 = pneg %p86
      $region42: #{resblock_forward.4} parent=39 // pred_check_branch
        %876 = sbr.rel (%p874) target = $region44
      $region43: #{resblock_forward.4} parent=39 // pred_region
        %s877 = smul.u32 32, %s16
        %p878 = scmp.lt.s32.totalorder %s877, 63
        %s879 = scalar_select %p878, %s877, 63
        %s880 = smul.addr %s879, 4
        %s881 = scalar_lea.vmem %s2, %s880
      $region44: #{resblock_forward.4} parent=39 // pred_fallthru
        _
      // Predicated region
      $region45: #{resblock_forward.4} parent=39 // pred_check
        %p882 = pneg %p112
      $region46: #{resblock_forward.4} parent=39 // pred_check_branch
        %884 = sbr.rel (%p882) target = $region48
      $region47: #{resblock_forward.4} parent=39 // pred_region
        %p885 = scmp.lt.s32.totalorder %s16, 1
        %s886 = scalar_select %p885, %s16, 1
        %s887 = smul.addr %s886, 2
        %s888 = scalar_lea.vmem %s3, %s887
      $region48: #{resblock_forward.4} parent=39 // pred_fallthru
        _
    $region40: #{resblock_forward.4} parent=5 // pred_fallthru
      _
  $region6: #{resblock_forward.4} parent=0 // loop_footer
    %s14 = sadd.s32 1, %s10
  $region7: #{resblock_forward.4} parent=0 // loop_footer_branch
    %9 = sbr.rel target = $region3
  $region8: #{resblock_forward.4} parent=0 // loop_exit
    _

// kernel: resblock_forward.7
$region0: #{resblock_forward.7}
  #allocation0 [shape = 'u32[]', space=smem, size = 0x4, offset = 0x4, fixed_abs, tag = 'smem constant byte address 0x4 - core index']
  #allocation1 [shape = 'u32[144,128]{1,0:T(1,128)}', space=vmem, size = 0x12000, scoped, tag = 'internal scratch']
  %s0 = inlined_call_operand.vmem [shape: bf16[512,128], index: 0, kind: input, shape index: {}]
  %s1 = inlined_call_operand.vmem [shape: f32[1,128], index: 1, kind: input, shape index: {}]
  %s2 = inlined_call_operand.vmem [shape: f32[1,128], index: 2, kind: input, shape index: {}]
  %s3 = inlined_call_operand.vmem [shape: bf16[512,128], index: 3, kind: input, shape index: {}]
  %s4 = inlined_call_operand.vmem [shape: f32[512,128], index: 4, kind: output, shape index: {}]
  %s5 = sld [smem:[#allocation0]]
  $region49: #{resblock_forward.7} parent=0
    _
  %s7 = ssub.s32 1, %s5
  %s8 = scalar_select 0, %s7, %s5
  loop: start=0, step=1, limit=4
  $region2: #{resblock_forward.7} parent=0 // loop_pre_header
    _
  $region3: #{resblock_forward.7} parent=0 // loop_header
    %s10 = sphi 0, %s14
    %p11 = scmp.ge.s32.totalorder %s10, 4
    %s20 = sphi 0, %s22
    %s23 = sphi 0, %s20
    %s24 = sphi 0, %s23
    %s40 = sphi 0, %s24
    %s44 = sphi 0, %s44
    %s46 = sphi 0, %s44
    %s47 = sphi 0, %s46
    %s61 = sphi 0, %s47
    %s65 = sphi 0, %s65
    %s67 = sphi 0, %s65
    %s68 = sphi 0, %s67
    %s82 = sphi 0, %s68
    %s88 = sphi 0, %s90
    %s91 = sphi 0, %s88
    %s92 = sphi 0, %s91
    %s108 = sphi 0, %s92
    %s114 = sphi 0, %s116
    %s117 = sphi 0, %s114
    %s118 = sphi 0, %s117
    %s134 = sphi 0, %s118
  $region4: #{resblock_forward.7} parent=0 // loop_header_branch
    %13 = sbr.rel (%p11) target = $region8
  $region5: #{resblock_forward.7} parent=0 // loop_body
    %s15 = ssub.s32 %s10, 1
    %s16 = ssub.s32 %s10, 2
    %s17 = sadd.s32 %s10, 1
    %s18 = ssub.s32 %s10, %s17
    %p19 = scmp.eq.s32.totalorder %s18, 0
    %s21 = sadd.s32 %s20, 1
    %s22 = scalar_select %p19, %s20, %s21
    %p25 = pneg %p19
    %p26 = scmp.eq.s32.totalorder %s10, 1
    %p27 = por %p25, %p26
    %p28 = scmp.ne.s32.totalorder %s20, %s23
    %p29 = scmp.eq.s32.totalorder %s10, 0
    %p30 = por %p28, %p29
    %p31 = scmp.ne.s32.totalorder %s20, %s23
    %p32 = scmp.eq.s32.totalorder %s15, 1
    %p33 = por %p31, %p32
    %p34 = scmp.ne.s32.totalorder %s23, %s24
    %p35 = scmp.eq.s32.totalorder %s15, 0
    %p36 = por %p34, %p35
    %p37 = scmp.ne.s32.totalorder %s23, %s24
    %p38 = scmp.eq.s32.totalorder %s16, 1
    %p39 = por %p37, %p38
    %p41 = scmp.ne.s32.totalorder %s24, %s40
    %p42 = scmp.eq.s32.totalorder %s16, 0
    %p43 = por %p41, %p42
    %s45 = sadd.s32 %s44, 1
    %p48 = scmp.eq.s32.totalorder %s10, 1
    %p49 = scmp.ne.s32.totalorder %s44, %s46
    %p50 = scmp.eq.s32.totalorder %s10, 0
    %p51 = por %p49, %p50
    %p52 = scmp.ne.s32.totalorder %s44, %s46
    %p53 = scmp.eq.s32.totalorder %s15, 1
    %p54 = por %p52, %p53
    %p55 = scmp.ne.s32.totalorder %s46, %s47
    %p56 = scmp.eq.s32.totalorder %s15, 0
    %p57 = por %p55, %p56
    %p58 = scmp.ne.s32.totalorder %s46, %s47
    %p59 = scmp.eq.s32.totalorder %s16, 1
    %p60 = por %p58, %p59
    %p62 = scmp.ne.s32.totalorder %s47, %s61
    %p63 = scmp.eq.s32.totalorder %s16, 0
    %p64 = por %p62, %p63
    %s66 = sadd.s32 %s65, 1
    %p69 = scmp.eq.s32.totalorder %s10, 1
    %p70 = scmp.ne.s32.totalorder %s65, %s67
    %p71 = scmp.eq.s32.totalorder %s10, 0
    %p72 = por %p70, %p71
    %p73 = scmp.ne.s32.totalorder %s65, %s67
    %p74 = scmp.eq.s32.totalorder %s15, 1
    %p75 = por %p73, %p74
    %p76 = scmp.ne.s32.totalorder %s67, %s68
    %p77 = scmp.eq.s32.totalorder %s15, 0
    %p78 = por %p76, %p77
    %p79 = scmp.ne.s32.totalorder %s67, %s68
    %p80 = scmp.eq.s32.totalorder %s16, 1
    %p81 = por %p79, %p80
    %p83 = scmp.ne.s32.totalorder %s68, %s82
    %p84 = scmp.eq.s32.totalorder %s16, 0
    %p85 = por %p83, %p84
    %s86 = ssub.s32 %s10, %s17
    %p87 = scmp.eq.s32.totalorder %s86, 0
    %s89 = sadd.s32 %s88, 1
    %s90 = scalar_select %p87, %s88, %s89
    %p93 = pneg %p87
    %p94 = scmp.eq.s32.totalorder %s10, 1
    %p95 = por %p93, %p94
    %p96 = scmp.ne.s32.totalorder %s88, %s91
    %p97 = scmp.eq.s32.totalorder %s10, 0
    %p98 = por %p96, %p97
    %p99 = scmp.ne.s32.totalorder %s88, %s91
    %p100 = scmp.eq.s32.totalorder %s15, 1
    %p101 = por %p99, %p100
    %p102 = scmp.ne.s32.totalorder %s91, %s92
    %p103 = scmp.eq.s32.totalorder %s15, 0
    %p104 = por %p102, %p103
    %p105 = scmp.ne.s32.totalorder %s91, %s92
    %p106 = scmp.eq.s32.totalorder %s16, 1
    %p107 = por %p105, %p106
    %p109 = scmp.ne.s32.totalorder %s92, %s108
    %p110 = scmp.eq.s32.totalorder %s16, 0
    %p111 = por %p109, %p110
    %s112 = ssub.s32 %s10, %s17
    %p113 = scmp.eq.s32.totalorder %s112, 0
    %s115 = sadd.s32 %s114, 1
    %s116 = scalar_select %p113, %s114, %s115
    %p119 = pneg %p113
    %p120 = scmp.eq.s32.totalorder %s10, 1
    %p121 = por %p119, %p120
    %p122 = scmp.ne.s32.totalorder %s114, %s117
    %p123 = scmp.eq.s32.totalorder %s10, 0
    %p124 = por %p122, %p123
    %p125 = scmp.ne.s32.totalorder %s114, %s117
    %p126 = scmp.eq.s32.totalorder %s15, 1
    %p127 = por %p125, %p126
    %p128 = scmp.ne.s32.totalorder %s117, %s118
    %p129 = scmp.eq.s32.totalorder %s15, 0
    %p130 = por %p128, %p129
    %p131 = scmp.ne.s32.totalorder %s117, %s118
    %p132 = scmp.eq.s32.totalorder %s16, 1
    %p133 = por %p131, %p132
    %p135 = scmp.ne.s32.totalorder %s118, %s134
    %p136 = scmp.eq.s32.totalorder %s16, 0
    %p137 = por %p135, %p136
    %p138 = scmp.le.s32.totalorder 1, %s10
    %p139 = scmp.lt.s32.totalorder %s10, 3
    %p140 = pnand %p138, %p139
    %p141 = pneg %p140
    // Predicated region
    $region9: #{resblock_forward.7} parent=5 // pred_check
      _
    $region10: #{resblock_forward.7} parent=5 // pred_check_branch
      %143 = sbr.rel (%p140) target = $region12
    $region11: #{resblock_forward.7} parent=5 // pred_region
      %s144 = ssub.s32 %s10, 1
      // Predicated region
      $region13: #{resblock_forward.7} parent=11 // pred_check
        %p145 = pneg %p57
      $region14: #{resblock_forward.7} parent=11 // pred_check_branch
        %147 = sbr.rel (%p145) target = $region16
      $region15: #{resblock_forward.7} parent=11 // pred_region
        _
      $region16: #{resblock_forward.7} parent=11 // pred_fallthru
        _
      // Predicated region
      $region17: #{resblock_forward.7} parent=11 // pred_check
        %p148 = pneg %p78
      $region18: #{resblock_forward.7} parent=11 // pred_check_branch
        %150 = sbr.rel (%p148) target = $region20
      $region19: #{resblock_forward.7} parent=11 // pred_region
        _
      $region20: #{resblock_forward.7} parent=11 // pred_fallthru
        _
    $region12: #{resblock_forward.7} parent=5 // pred_fallthru
      _
    %p151 = scmp.lt.s32.totalorder %s10, 2
    // Predicated region
    $region21: #{resblock_forward.7} parent=5 // pred_check
      %p152 = pneg %p151
    $region22: #{resblock_forward.7} parent=5 // pred_check_branch
      %154 = sbr.rel (%p152) target = $region24
    $region23: #{resblock_forward.7} parent=5 // pred_region
      // Predicated region
      $region25: #{resblock_forward.7} parent=23 // pred_check
        %p155 = pneg %p30
      $region26: #{resblock_forward.7} parent=23 // pred_check_branch
        %157 = sbr.rel (%p155) target = $region28
      $region27: #{resblock_forward.7} parent=23 // pred_region
        %s158 = smul.u32 32, %s10
        %p159 = scmp.lt.s32.totalorder %s158, 63
        %s160 = scalar_select %p159, %s158, 63
        %s161 = smul.addr %s160, 4
        %s162 = scalar_lea.vmem %s0, %s161
        %s163 = smul.u32 32, %s10
      $region28: #{resblock_forward.7} parent=23 // pred_fallthru
        _
      // Predicated region
      $region29: #{resblock_forward.7} parent=23 // pred_check
        %p164 = pneg %p98
      $region30: #{resblock_forward.7} parent=23 // pred_check_branch
        %166 = sbr.rel (%p164) target = $region32
      $region31: #{resblock_forward.7} parent=23 // pred_region
        %s167 = smul.u32 32, %s10
        %p168 = scmp.lt.s32.totalorder %s167, 63
        %s169 = scalar_select %p168, %s167, 63
        %s170 = smul.addr %s169, 4
        %s171 = scalar_lea.vmem %s3, %s170
        %s172 = smul.u32 32, %s10
      $region32: #{resblock_forward.7} parent=23 // pred_fallthru
        _
    $region24: #{resblock_forward.7} parent=5 // pred_fallthru
      _
    %p173 = scmp.le.s32.totalorder 1, %s10
    %p174 = scmp.lt.s32.totalorder %s10, 3
    %p175 = pnand %p173, %p174
    %p176 = pneg %p175
    // Predicated region
    $region33: #{resblock_forward.7} parent=5 // pred_check
      _
    $region34: #{resblock_forward.7} parent=5 // pred_check_branch
      %178 = sbr.rel (%p175) target = $region36
    $region35: #{resblock_forward.7} parent=5 // pred_region
      %s179 = ssub.s32 %s10, 1
      %s180 = smul.u32 32, %s15
      %p181 = scmp.lt.s32.totalorder %s180, 63
      %s182 = scalar_select %p181, %s180, 63
      %s183 = smul.addr %s182, 4
      %s184 = scalar_lea.vmem %s0, %s183
      %p185 = pneg %p36
      %p186 = pneg %p33
      %p187 = pneg %p57
      %p188 = pneg %p54
      %p189 = pneg %p78
      %p190 = pneg %p75
      %s191 = smul.u32 32, %s15
      %p192 = scmp.lt.s32.totalorder %s191, 63
      %s193 = scalar_select %p192, %s191, 63
      %s194 = smul.addr %s193, 4
      %s195 = scalar_lea.vmem %s3, %s194
      %p196 = pneg %p104
      %p197 = pneg %p101
      %p198 = pneg %p130
      %p199 = pneg %p127
      %s200 = smul.u32 32, %s15
      %p201 = scmp.lt.s32.totalorder %s200, 63
      %s202 = scalar_select %p201, %s200, 63
      %s203 = smul.addr %s202, 8
      %s204 = scalar_lea.vmem %s4, %s203
      %s205 = smul.u32 32, %s15
      %p206 = scmp.lt.s32.totalorder %s205, 63
      %s207 = scalar_select %p206, %s205, 63
      %s208 = smul.addr %s207, 4
      %s209 = scalar_lea.vmem %s0, %s208
      %s210 = smul.u32 32, %s15
      %s211 = smul.u32 32, %s15
      %p212 = scmp.lt.s32.totalorder %s211, 63
      %s213 = scalar_select %p212, %s211, 63
      %s214 = smul.addr %s213, 4
      %s215 = scalar_lea.vmem %s3, %s214
      %s216 = smul.u32 32, %s15
      %s217 = smul.u32 32, %s15
      %p218 = scmp.lt.s32.totalorder %s217, 63
      %s219 = scalar_select %p218, %s217, 63
      %s220 = smul.addr %s219, 8
      %s221 = scalar_lea.vmem %s4, %s220
      %s222 = smul.u32 32, %s15
      %v223 = vld [vmem:[%s209] sm:$0xf]
      %v224 = vld [vmem:[%s209 + $0x4] sm:$0xf]
      %v225 = vld [vmem:[%s209 + $0x8] sm:$0xf]
      %v226 = vld [vmem:[%s209 + $0xc] sm:$0xf]
      %v227 = vld [vmem:[%s209 + $0x10] sm:$0xf]
      %v228 = vld [vmem:[%s209 + $0x14] sm:$0xf]
      %v229 = vld [vmem:[%s209 + $0x18] sm:$0xf]
      %v230 = vld [vmem:[%s209 + $0x1c] sm:$0xf]
      %v231 = vld [vmem:[%s209 + $0x20] sm:$0xf]
      %v232 = vld [vmem:[%s209 + $0x24] sm:$0xf]
      %v233 = vld [vmem:[%s209 + $0x28] sm:$0xf]
      %v234 = vld [vmem:[%s209 + $0x2c] sm:$0xf]
      %v235 = vld [vmem:[%s209 + $0x30] sm:$0xf]
      %v236 = vld [vmem:[%s209 + $0x34] sm:$0xf]
      %v237 = vld [vmem:[%s209 + $0x38] sm:$0xf]
      %v238 = vld [vmem:[%s209 + $0x3c] sm:$0xf]
      %v239 = vld [vmem:[%s209 + $0x40] sm:$0xf]
      %v240 = vld [vmem:[%s209 + $0x44] sm:$0xf]
      %v241 = vld [vmem:[%s209 + $0x48] sm:$0xf]
      %v242 = vld [vmem:[%s209 + $0x4c] sm:$0xf]
      %v243 = vld [vmem:[%s209 + $0x50] sm:$0xf]
      %v244 = vld [vmem:[%s209 + $0x54] sm:$0xf]
      %v245 = vld [vmem:[%s209 + $0x58] sm:$0xf]
      %v246 = vld [vmem:[%s209 + $0x5c] sm:$0xf]
      %v247 = vld [vmem:[%s209 + $0x60] sm:$0xf]
      %v248 = vld [vmem:[%s209 + $0x64] sm:$0xf]
      %v249 = vld [vmem:[%s209 + $0x68] sm:$0xf]
      %v250 = vld [vmem:[%s209 + $0x6c] sm:$0xf]
      %v251 = vld [vmem:[%s209 + $0x70] sm:$0xf]
      %v252 = vld [vmem:[%s209 + $0x74] sm:$0xf]
      %v253 = vld [vmem:[%s209 + $0x78] sm:$0xf]
      %v254 = vld [vmem:[%s209 + $0x7c] sm:$0xf]
      %v255 = vunpack.c.l.bf16 %v223
      %v256 = vunpack.c.l.bf16 %v224
      %v257 = vunpack.c.l.bf16 %v225
      %v258 = vunpack.c.l.bf16 %v226
      %v259 = vunpack.c.l.bf16 %v227
      %v260 = vunpack.c.l.bf16 %v228
      %v261 = vunpack.c.l.bf16 %v229
      %v262 = vunpack.c.l.bf16 %v230
      %v263 = vunpack.c.l.bf16 %v231
      %v264 = vunpack.c.l.bf16 %v232
      %v265 = vunpack.c.l.bf16 %v233
      %v266 = vunpack.c.l.bf16 %v234
      %v267 = vunpack.c.l.bf16 %v235
      %v268 = vunpack.c.l.bf16 %v236
      %v269 = vunpack.c.l.bf16 %v237
      %v270 = vunpack.c.l.bf16 %v238
      %v271 = vunpack.c.l.bf16 %v239
      %v272 = vunpack.c.l.bf16 %v240
      %v273 = vunpack.c.l.bf16 %v241
      %v274 = vunpack.c.l.bf16 %v242
      %v275 = vunpack.c.l.bf16 %v243
      %v276 = vunpack.c.l.bf16 %v244
      %v277 = vunpack.c.l.bf16 %v245
      %v278 = vunpack.c.l.bf16 %v246
      %v279 = vunpack.c.l.bf16 %v247
      %v280 = vunpack.c.l.bf16 %v248
      %v281 = vunpack.c.l.bf16 %v249
      %v282 = vunpack.c.l.bf16 %v250
      %v283 = vunpack.c.l.bf16 %v251
      %v284 = vunpack.c.l.bf16 %v252
      %v285 = vunpack.c.l.bf16 %v253
      %v286 = vunpack.c.l.bf16 %v254
      %v287 = vld [vmem:[%s1] sm:$0x1]
      %v289 = vlaneseq
      %v290 = vshrl.u32 %v289, 7
      %v291 = vsub.s32 0, %v290
      %v292 = vrot.slane %v287, %v291
      %v294 = vmul.f32 %v255, %v292
      %v295 = vmul.f32 %v256, %v292
      %v296 = vmul.f32 %v257, %v292
      %v297 = vmul.f32 %v258, %v292
      %v298 = vmul.f32 %v259, %v292
      %v299 = vmul.f32 %v260, %v292
      %v300 = vmul.f32 %v261, %v292
      %v301 = vmul.f32 %v262, %v292
      %v302 = vmul.f32 %v263, %v292
      %v303 = vmul.f32 %v264, %v292
      %v304 = vmul.f32 %v265, %v292
      %v305 = vmul.f32 %v266, %v292
      %v306 = vmul.f32 %v267, %v292
      %v307 = vmul.f32 %v268, %v292
      %v308 = vmul.f32 %v269, %v292
      %v309 = vmul.f32 %v270, %v292
      %v310 = vmul.f32 %v271, %v292
      %v311 = vmul.f32 %v272, %v292
      %v312 = vmul.f32 %v273, %v292
      %v313 = vmul.f32 %v274, %v292
      %v314 = vmul.f32 %v275, %v292
      %v315 = vmul.f32 %v276, %v292
      %v316 = vmul.f32 %v277, %v292
      %v317 = vmul.f32 %v278, %v292
      %v318 = vmul.f32 %v279, %v292
      %v319 = vmul.f32 %v280, %v292
      %v320 = vmul.f32 %v281, %v292
      %v321 = vmul.f32 %v282, %v292
      %v322 = vmul.f32 %v283, %v292
      %v323 = vmul.f32 %v284, %v292
      %v324 = vmul.f32 %v285, %v292
      %v325 = vmul.f32 %v286, %v292
      %v326 = vld [vmem:[%s2] sm:$0x1]
      %v328 = vlaneseq
      %v329 = vshrl.u32 %v328, 7
      %v330 = vsub.s32 0, %v329
      %v331 = vrot.slane %v326, %v330
      %v333 = vadd.f32 %v294, %v331
      %v334 = vadd.f32 %v295, %v331
      %v335 = vadd.f32 %v296, %v331
      %v336 = vadd.f32 %v297, %v331
      %v337 = vadd.f32 %v298, %v331
      %v338 = vadd.f32 %v299, %v331
      %v339 = vadd.f32 %v300, %v331
      %v340 = vadd.f32 %v301, %v331
      %v341 = vadd.f32 %v302, %v331
      %v342 = vadd.f32 %v303, %v331
      %v343 = vadd.f32 %v304, %v331
      %v344 = vadd.f32 %v305, %v331
      %v345 = vadd.f32 %v306, %v331
      %v346 = vadd.f32 %v307, %v331
      %v347 = vadd.f32 %v308, %v331
      %v348 = vadd.f32 %v309, %v331
      %v349 = vadd.f32 %v310, %v331
      %v350 = vadd.f32 %v311, %v331
      %v351 = vadd.f32 %v312, %v331
      %v352 = vadd.f32 %v313, %v331
      %v353 = vadd.f32 %v314, %v331
      %v354 = vadd.f32 %v315, %v331
      %v355 = vadd.f32 %v316, %v331
      %v356 = vadd.f32 %v317, %v331
      %v357 = vadd.f32 %v318, %v331
      %v358 = vadd.f32 %v319, %v331
      %v359 = vadd.f32 %v320, %v331
      %v360 = vadd.f32 %v321, %v331
      %v361 = vadd.f32 %v322, %v331
      %v362 = vadd.f32 %v323, %v331
      %v363 = vadd.f32 %v324, %v331
      %v364 = vadd.f32 %v325, %v331
      %v365 = vld [vmem:[%s215] sm:$0xf]
      %v366 = vld [vmem:[%s215 + $0x4] sm:$0xf]
      %v367 = vld [vmem:[%s215 + $0x8] sm:$0xf]
      %v368 = vld [vmem:[%s215 + $0xc] sm:$0xf]
      %v369 = vld [vmem:[%s215 + $0x10] sm:$0xf]
      %v370 = vld [vmem:[%s215 + $0x14] sm:$0xf]
      %v371 = vld [vmem:[%s215 + $0x18] sm:$0xf]
      %v372 = vld [vmem:[%s215 + $0x1c] sm:$0xf]
      %v373 = vld [vmem:[%s215 + $0x20] sm:$0xf]
      %v374 = vld [vmem:[%s215 + $0x24] sm:$0xf]
      %v375 = vld [vmem:[%s215 + $0x28] sm:$0xf]
      %v376 = vld [vmem:[%s215 + $0x2c] sm:$0xf]
      %v377 = vld [vmem:[%s215 + $0x30] sm:$0xf]
      %v378 = vld [vmem:[%s215 + $0x34] sm:$0xf]
      %v379 = vld [vmem:[%s215 + $0x38] sm:$0xf]
      %v380 = vld [vmem:[%s215 + $0x3c] sm:$0xf]
      %v381 = vld [vmem:[%s215 + $0x40] sm:$0xf]
      %v382 = vld [vmem:[%s215 + $0x44] sm:$0xf]
      %v383 = vld [vmem:[%s215 + $0x48] sm:$0xf]
      %v384 = vld [vmem:[%s215 + $0x4c] sm:$0xf]
      %v385 = vld [vmem:[%s215 + $0x50] sm:$0xf]
      %v386 = vld [vmem:[%s215 + $0x54] sm:$0xf]
      %v387 = vld [vmem:[%s215 + $0x58] sm:$0xf]
      %v388 = vld [vmem:[%s215 + $0x5c] sm:$0xf]
      %v389 = vld [vmem:[%s215 + $0x60] sm:$0xf]
      %v390 = vld [vmem:[%s215 + $0x64] sm:$0xf]
      %v391 = vld [vmem:[%s215 + $0x68] sm:$0xf]
      %v392 = vld [vmem:[%s215 + $0x6c] sm:$0xf]
      %v393 = vld [vmem:[%s215 + $0x70] sm:$0xf]
      %v394 = vld [vmem:[%s215 + $0x74] sm:$0xf]
      %v395 = vld [vmem:[%s215 + $0x78] sm:$0xf]
      %v396 = vld [vmem:[%s215 + $0x7c] sm:$0xf]
      %v397 = vunpack.c.l.bf16 %v365
      %v398 = vunpack.c.l.bf16 %v366
      %v399 = vunpack.c.l.bf16 %v367
      %v400 = vunpack.c.l.bf16 %v368
      %v401 = vunpack.c.l.bf16 %v369
      %v402 = vunpack.c.l.bf16 %v370
      %v403 = vunpack.c.l.bf16 %v371
      %v404 = vunpack.c.l.bf16 %v372
      %v405 = vunpack.c.l.bf16 %v373
      %v406 = vunpack.c.l.bf16 %v374
      %v407 = vunpack.c.l.bf16 %v375
      %v408 = vunpack.c.l.bf16 %v376
      %v409 = vunpack.c.l.bf16 %v377
      %v410 = vunpack.c.l.bf16 %v378
      %v411 = vunpack.c.l.bf16 %v379
      %v412 = vunpack.c.l.bf16 %v380
      %v413 = vunpack.c.l.bf16 %v381
      %v414 = vunpack.c.l.bf16 %v382
      %v415 = vunpack.c.l.bf16 %v383
      %v416 = vunpack.c.l.bf16 %v384
      %v417 = vunpack.c.l.bf16 %v385
      %v418 = vunpack.c.l.bf16 %v386
      %v419 = vunpack.c.l.bf16 %v387
      %v420 = vunpack.c.l.bf16 %v388
      %v421 = vunpack.c.l.bf16 %v389
      %v422 = vunpack.c.l.bf16 %v390
      %v423 = vunpack.c.l.bf16 %v391
      %v424 = vunpack.c.l.bf16 %v392
      %v425 = vunpack.c.l.bf16 %v393
      %v426 = vunpack.c.l.bf16 %v394
      %v427 = vunpack.c.l.bf16 %v395
      %v428 = vunpack.c.l.bf16 %v396
      %v429 = vadd.f32 %v333, %v397
      %v430 = vadd.f32 %v334, %v398
      %v431 = vadd.f32 %v335, %v399
      %v432 = vadd.f32 %v336, %v400
      %v433 = vadd.f32 %v337, %v401
      %v434 = vadd.f32 %v338, %v402
      %v435 = vadd.f32 %v339, %v403
      %v436 = vadd.f32 %v340, %v404
      %v437 = vadd.f32 %v341, %v405
      %v438 = vadd.f32 %v342, %v406
      %v439 = vadd.f32 %v343, %v407
      %v440 = vadd.f32 %v344, %v408
      %v441 = vadd.f32 %v345, %v409
      %v442 = vadd.f32 %v346, %v410
      %v443 = vadd.f32 %v347, %v411
      %v444 = vadd.f32 %v348, %v412
      %v445 = vadd.f32 %v349, %v413
      %v446 = vadd.f32 %v350, %v414
      %v447 = vadd.f32 %v351, %v415
      %v448 = vadd.f32 %v352, %v416
      %v449 = vadd.f32 %v353, %v417
      %v450 = vadd.f32 %v354, %v418
      %v451 = vadd.f32 %v355, %v419
      %v452 = vadd.f32 %v356, %v420
      %v453 = vadd.f32 %v357, %v421
      %v454 = vadd.f32 %v358, %v422
      %v455 = vadd.f32 %v359, %v423
      %v456 = vadd.f32 %v360, %v424
      %v457 = vadd.f32 %v361, %v425
      %v458 = vadd.f32 %v362, %v426
      %v459 = vadd.f32 %v363, %v427
      %v460 = vadd.f32 %v364, %v428
      %v461 = vmax.f32 %v429, 0.0
      %v462 = vmax.f32 %v430, 0.0
      %v463 = vmax.f32 %v431, 0.0
      %v464 = vmax.f32 %v432, 0.0
      %v465 = vmax.f32 %v433, 0.0
      %v466 = vmax.f32 %v434, 0.0
      %v467 = vmax.f32 %v435, 0.0
      %v468 = vmax.f32 %v436, 0.0
      %v469 = vmax.f32 %v437, 0.0
      %v470 = vmax.f32 %v438, 0.0
      %v471 = vmax.f32 %v439, 0.0
      %v472 = vmax.f32 %v440, 0.0
      %v473 = vmax.f32 %v441, 0.0
      %v474 = vmax.f32 %v442, 0.0
      %v475 = vmax.f32 %v443, 0.0
      %v476 = vmax.f32 %v444, 0.0
      %v477 = vmax.f32 %v445, 0.0
      %v478 = vmax.f32 %v446, 0.0
      %v479 = vmax.f32 %v447, 0.0
      %v480 = vmax.f32 %v448, 0.0
      %v481 = vmax.f32 %v449, 0.0
      %v482 = vmax.f32 %v450, 0.0
      %v483 = vmax.f32 %v451, 0.0
      %v484 = vmax.f32 %v452, 0.0
      %v485 = vmax.f32 %v453, 0.0
      %v486 = vmax.f32 %v454, 0.0
      %v487 = vmax.f32 %v455, 0.0
      %v488 = vmax.f32 %v456, 0.0
      %v489 = vmax.f32 %v457, 0.0
      %v490 = vmax.f32 %v458, 0.0
      %v491 = vmax.f32 %v459, 0.0
      %v492 = vmax.f32 %v460, 0.0
      %493 = vst [vmem:[%s221] sm:$0xff] %v461
      %494 = vst [vmem:[%s221 + $0x8] sm:$0xff] %v462
      %495 = vst [vmem:[%s221 + $0x10] sm:$0xff] %v463
      %496 = vst [vmem:[%s221 + $0x18] sm:$0xff] %v464
      %497 = vst [vmem:[%s221 + $0x20] sm:$0xff] %v465
      %498 = vst [vmem:[%s221 + $0x28] sm:$0xff] %v466
      %499 = vst [vmem:[%s221 + $0x30] sm:$0xff] %v467
      %500 = vst [vmem:[%s221 + $0x38] sm:$0xff] %v468
      %501 = vst [vmem:[%s221 + $0x40] sm:$0xff] %v469
      %502 = vst [vmem:[%s221 + $0x48] sm:$0xff] %v470
      %503 = vst [vmem:[%s221 + $0x50] sm:$0xff] %v471
      %504 = vst [vmem:[%s221 + $0x58] sm:$0xff] %v472
      %505 = vst [vmem:[%s221 + $0x60] sm:$0xff] %v473
      %506 = vst [vmem:[%s221 + $0x68] sm:$0xff] %v474
      %507 = vst [vmem:[%s221 + $0x70] sm:$0xff] %v475
      %508 = vst [vmem:[%s221 + $0x78] sm:$0xff] %v476
      %509 = vst [vmem:[%s221 + $0x80] sm:$0xff] %v477
      %510 = vst [vmem:[%s221 + $0x88] sm:$0xff] %v478
      %511 = vst [vmem:[%s221 + $0x90] sm:$0xff] %v479
      %512 = vst [vmem:[%s221 + $0x98] sm:$0xff] %v480
      %513 = vst [vmem:[%s221 + $0xa0] sm:$0xff] %v481
      %514 = vst [vmem:[%s221 + $0xa8] sm:$0xff] %v482
      %515 = vst [vmem:[%s221 + $0xb0] sm:$0xff] %v483
      %516 = vst [vmem:[%s221 + $0xb8] sm:$0xff] %v484
      %517 = vst [vmem:[%s221 + $0xc0] sm:$0xff] %v485
      %518 = vst [vmem:[%s221 + $0xc8] sm:$0xff] %v486
      %519 = vst [vmem:[%s221 + $0xd0] sm:$0xff] %v487
      %520 = vst [vmem:[%s221 + $0xd8] sm:$0xff] %v488
      %521 = vst [vmem:[%s221 + $0xe0] sm:$0xff] %v489
      %522 = vst [vmem:[%s221 + $0xe8] sm:$0xff] %v490
      %523 = vst [vmem:[%s221 + $0xf0] sm:$0xff] %v491
      %524 = vst [vmem:[%s221 + $0xf8] sm:$0xff] %v492
      %s525 = smul.u32 32, %s15
      %p526 = scmp.lt.s32.totalorder %s525, 63
      %s527 = scalar_select %p526, %s525, 63
      %s528 = smul.addr %s527, 8
      %s529 = scalar_lea.vmem %s4, %s528
      // Predicated region
      $region37: #{resblock_forward.7} parent=35 // pred_check
        %p530 = pneg %p127
      $region38: #{resblock_forward.7} parent=35 // pred_check_branch
        %532 = sbr.rel (%p530) target = $region40
      $region39: #{resblock_forward.7} parent=35 // pred_region
        %s533 = smul.u32 32, %s15
      $region40: #{resblock_forward.7} parent=35 // pred_fallthru
        _
    $region36: #{resblock_forward.7} parent=5 // pred_fallthru
      _
    %p534 = scmp.le.s32.totalorder 2, %s10
    // Predicated region
    $region41: #{resblock_forward.7} parent=5 // pred_check
      %p535 = pneg %p534
    $region42: #{resblock_forward.7} parent=5 // pred_check_branch
      %537 = sbr.rel (%p535) target = $region44
    $region43: #{resblock_forward.7} parent=5 // pred_region
      %s538 = ssub.s32 %s10, 2
      // Predicated region
      $region45: #{resblock_forward.7} parent=43 // pred_check
        %p539 = pneg %p133
      $region46: #{resblock_forward.7} parent=43 // pred_check_branch
        %541 = sbr.rel (%p539) target = $region48
      $region47: #{resblock_forward.7} parent=43 // pred_region
        %s542 = smul.u32 32, %s16
        %p543 = scmp.lt.s32.totalorder %s542, 63
        %s544 = scalar_select %p543, %s542, 63
        %s545 = smul.addr %s544, 8
        %s546 = scalar_lea.vmem %s4, %s545
      $region48: #{resblock_forward.7} parent=43 // pred_fallthru
        _
    $region44: #{resblock_forward.7} parent=5 // pred_fallthru
      _
  $region6: #{resblock_forward.7} parent=0 // loop_footer
    %s14 = sadd.s32 1, %s10
  $region7: #{resblock_forward.7} parent=0 // loop_footer_branch
    %9 = sbr.rel target = $region3
  $region8: #{resblock_forward.7} parent=0 // loop_exit
    _

</llo_original>
